<compile_context>
chip_gen: v7x
topology: tpu7x:2x2x1
jax: 0.10.0
libtpu: 0.0.40
codegen_flags: <defaults>
</compile_context>

<pallas_src>
import jax
import jax.numpy as jnp
from jax.experimental import pallas as pl
from jax.experimental.pallas import tpu as pltpu

C = 512          # channel count hard-coded in the module
KH = KW = 4
SH = SW = 2
PH = PW = 1
BN_EPS = 1e-5
K_PRUNED = C * 4  # 2048: 4 non-padding taps per input channel


def _disc_kernel(patches_ref, wconv_ref, wcs_ref, cshift_ref,
                 w1_ref, w1s_ref, b1_ref, w2_ref, w2s_ref, b2_ref, out_ref):
    # conv1 as a pruned-im2col GEMM.  Weight may be int8-stored; dequant scale and
    # conv-bias + BatchNorm(eval) shift are applied on the f32 accumulator.
    h = jnp.dot(patches_ref[...], wconv_ref[...].astype(jnp.bfloat16),
                preferred_element_type=jnp.float32)
    h = jnp.maximum(h * wcs_ref[...] + cshift_ref[...], 0.0)      # BN + ReLU
    # (Dropout is identity in eval mode.)
    h = jnp.dot(h.astype(jnp.bfloat16), w1_ref[...].astype(jnp.bfloat16),
                preferred_element_type=jnp.float32)
    h = jnp.maximum(h * w1s_ref[...] + b1_ref[...], 0.0)          # layer1 + ReLU
    h = jnp.dot(h.astype(jnp.bfloat16), w2_ref[...].astype(jnp.bfloat16),
                preferred_element_type=jnp.float32)
    out_ref[...] = jax.nn.sigmoid(h * w2s_ref[...] + b2_ref[...])  # layer2 + Sigmoid


def init_params(key, n_attributes):
    ks = jax.random.split(key, 10)
    return dict(
        wconv=jax.random.normal(ks[0], (C, C, KH, KW), jnp.float32) * 0.02,
        bconv=jax.random.normal(ks[1], (C,), jnp.float32) * 0.02,
        gamma=1.0 + 0.1 * jax.random.normal(ks[2], (C,), jnp.float32),
        beta=0.1 * jax.random.normal(ks[3], (C,), jnp.float32),
        rmean=0.1 * jax.random.normal(ks[4], (C,), jnp.float32),
        rvar=jnp.abs(jax.random.normal(ks[5], (C,), jnp.float32)) + 0.5,
        w1=jax.random.normal(ks[6], (C, C), jnp.float32) * 0.02,      # torch Linear: (out, in)
        b1=jax.random.normal(ks[7], (C,), jnp.float32) * 0.02,
        w2=jax.random.normal(ks[8], (n_attributes, C), jnp.float32) * 0.02,
        b2=jax.random.normal(ks[9], (n_attributes,), jnp.float32) * 0.02,
    )


def _quantize_cols(w):
    """Symmetric per-output-column int8 quantization: w ≈ q * scale."""
    maxabs = jnp.max(jnp.abs(w), axis=0, keepdims=True)
    scale = jnp.maximum(maxabs, 1e-12) / 127.0
    q = jnp.clip(jnp.rint(w / scale), -127, 127).astype(jnp.int8)
    return q, scale.astype(jnp.float32)


def prepare_params(params, weight_dtype=jnp.int8):
    """One-time weight prep: pruned GEMM-form conv weight with BN folded in,
    int8 (or bf16) storage with per-column scales, lane padding.  Call once."""
    n_attr = params["b2"].shape[0]
    NP = max(128, pl.cdiv(n_attr, 128) * 128)             # pad output lanes to 128

    bn_scale = params["gamma"] / jnp.sqrt(params["rvar"] + BN_EPS)        # (512,)
    # combined shift = conv bias * bn_scale + beta - running_mean * bn_scale
    cshift = params["bconv"] * bn_scale + params["beta"] - params["rmean"] * bn_scale

    # Pruned conv weight in GEMM form.  Taps (kh,kw) in {1,2}x{1,2} (row-major)
    # line up exactly with the row-major 2x2 spatial order of z.reshape(B, 2048).
    w_conv = params["wconv"][:, :, 1:3, 1:3].reshape(C, K_PRUNED).T       # (2048, 512)
    w_conv = w_conv * bn_scale[None, :]                                    # fold BN scale
    w1 = params["w1"].T                                                    # (512, 512) in->out
    w2 = params["w2"].T                                                    # (512, n_attr)

    if weight_dtype == jnp.int8:
        wconv_q, wconv_s = _quantize_cols(w_conv)
        w1_q, w1_s = _quantize_cols(w1)
        w2_q, w2_s = _quantize_cols(w2)
    else:   # bf16 storage (e.g. v7x preference): identity scales
        wconv_q, wconv_s = w_conv.astype(jnp.bfloat16), jnp.ones((1, C), jnp.float32)
        w1_q, w1_s = w1.astype(jnp.bfloat16), jnp.ones((1, C), jnp.float32)
        w2_q, w2_s = w2.astype(jnp.bfloat16), jnp.ones((1, n_attr), jnp.float32)

    # Lane-pad layer2 to NP output columns (padded cols are sliced off later).
    w2_q = jnp.pad(w2_q, ((0, 0), (0, NP - n_attr)))
    w2_s = jnp.pad(w2_s, ((0, 0), (0, NP - n_attr)), constant_values=1.0)
    b2 = jnp.pad(params["b2"], (0, NP - n_attr)).reshape(1, NP).astype(jnp.float32)

    return dict(
        wconv_q=wconv_q, wconv_s=wconv_s,
        cshift=cshift.reshape(1, C).astype(jnp.float32),
        w1_q=w1_q, w1_s=w1_s, b1=params["b1"].reshape(1, C).astype(jnp.float32),
        w2_q=w2_q, w2_s=w2_s, b2=b2,
        n_attr=n_attr, NP=NP,
    )


def discriminator_forward(z, prepped):
    B, Cc, H, W = z.shape
    assert Cc == C and H == 2 and W == 2, "FaderNetwork latent is (B, 512, 2, 2)"

    M = B                                               # OH = OW = 1
    NP = prepped["NP"]
    # Tile the batch dimension; cap the per-step tile at 256 rows.
    if M <= 256:
        MP = max(16, -(-M // 16) * 16)                  # bf16 min sublane tile is 16
        TM = MP
    else:
        TM = 256
        MP = -(-M // TM) * TM

    # Pruned im2col == plain reshape for a 2x2 NCHW map (bit-identical column order).
    patches = z.reshape(M, K_PRUNED).astype(jnp.bfloat16)
    if MP != M:
        patches = jnp.pad(patches, ((0, MP - M), (0, 0)))

    # Weights use constant index_maps -> DMA'd once, resident across the M steps.
    # (Default double-buffering duplicates ~1.3 MiB of constant operands; harmless
    #  at this footprint, so we keep the default rather than pl.Buffered(1).)
    out = pl.pallas_call(
        _disc_kernel,
        out_shape=jax.ShapeDtypeStruct((MP, NP), jnp.float32),
        grid_spec=pltpu.PrefetchScalarGridSpec(
            num_scalar_prefetch=0,
            grid=(MP // TM,),
            in_specs=[
                pl.BlockSpec((TM, K_PRUNED), lambda i: (i, 0)),   # pruned patches (bf16)
                pl.BlockSpec((K_PRUNED, C), lambda i: (0, 0)),    # conv weight (int8/bf16)
                pl.BlockSpec((1, C), lambda i: (0, 0)),           # conv dequant scale
                pl.BlockSpec((1, C), lambda i: (0, 0)),           # conv-bias + BN shift
                pl.BlockSpec((C, C), lambda i: (0, 0)),           # layer1 weight
                pl.BlockSpec((1, C), lambda i: (0, 0)),           # layer1 dequant scale
                pl.BlockSpec((1, C), lambda i: (0, 0)),           # layer1 bias
                pl.BlockSpec((C, NP), lambda i: (0, 0)),          # layer2 weight (lane-padded)
                pl.BlockSpec((1, NP), lambda i: (0, 0)),          # layer2 dequant scale
                pl.BlockSpec((1, NP), lambda i: (0, 0)),          # layer2 bias
            ],
            out_specs=pl.BlockSpec((TM, NP), lambda i: (i, 0)),
        ),
        compiler_params=pltpu.CompilerParams(
            dimension_semantics=("parallel",),   # batch axis: v7x can split across its 2 TCs
        ),
    )(patches, prepped["wconv_q"], prepped["wconv_s"], prepped["cshift"],
      prepped["w1_q"], prepped["w1_s"], prepped["b1"],
      prepped["w2_q"], prepped["w2_s"], prepped["b2"])

    return out[:M, :prepped["n_attr"]]


def reference(z, params):
    """Pure-JAX f32 reference mirroring the PyTorch module in eval mode."""
    conv = jax.lax.conv_general_dilated(
        z, params["wconv"], window_strides=(SH, SW), padding=((PH, PH), (PW, PW)),
        dimension_numbers=("NCHW", "OIHW", "NCHW"))
    conv = conv + params["bconv"][None, :, None, None]
    bn = (conv - params["rmean"][None, :, None, None]) / jnp.sqrt(
        params["rvar"][None, :, None, None] + BN_EPS)
    bn = bn * params["gamma"][None, :, None, None] + params["beta"][None, :, None, None]
    h = jnp.maximum(bn, 0.0)
    h = h.reshape(-1, C)                                # z.view(-1, 512) with OH=OW=1
    h = jnp.maximum(h @ params["w1"].T + params["b1"], 0.0)
    h = h @ params["w2"].T + params["b2"]
    return jax.nn.sigmoid(h)


if __name__ == "__main__":
    n_attributes = 10
    key = jax.random.PRNGKey(0)
    kz, kp = jax.random.split(key)
    # Latent code for the FaderNetwork discriminator: (B, 512, 2, 2)
    z = jax.random.normal(kz, (2, C, 2, 2), jnp.float32)
    params = init_params(kp, n_attributes)
    prepped = prepare_params(params)                    # one-time weight prep (hoisted)

    fwd = jax.jit(lambda latents: discriminator_forward(latents, prepped))
    y = jax.block_until_ready(fwd(z))

    y_ref = reference(z, params)
    assert y.shape == (2, n_attributes), y.shape
    # int8 weight storage + bf16 GEMM operands (f32 accumulation) vs f32 reference.
    max_diff = float(jnp.max(jnp.abs(y - y_ref)))
    assert jnp.allclose(y, y_ref, atol=3e-2, rtol=2e-2), (
        "mismatch vs reference: max abs diff %e" % max_diff)
    print("KERNEL_OK")
</pallas_src>

<mosaic_0001>
module attributes {stable_mosaic.version = 11 : i64} {
  func.func @_disc_kernel(%arg0: i32, %arg1: memref<16x2048xbf16, #tpu.memory_space<vmem>>, %arg2: memref<2048x512xi8, #tpu.memory_space<vmem>>, %arg3: memref<1x512xf32, #tpu.memory_space<vmem>>, %arg4: memref<1x512xf32, #tpu.memory_space<vmem>>, %arg5: memref<512x512xi8, #tpu.memory_space<vmem>>, %arg6: memref<1x512xf32, #tpu.memory_space<vmem>>, %arg7: memref<1x512xf32, #tpu.memory_space<vmem>>, %arg8: memref<512x128xi8, #tpu.memory_space<vmem>>, %arg9: memref<1x128xf32, #tpu.memory_space<vmem>>, %arg10: memref<1x128xf32, #tpu.memory_space<vmem>>, %arg11: memref<16x128xf32, #tpu.memory_space<vmem>>) attributes {dimension_semantics = [#tpu.dimension_semantics<parallel>], iteration_bounds = array<i64: 1>, scalar_prefetch = 0 : i64, scratch_operands = 0 : i64, tpu.core_type = #tpu.core_type<tc>, window_params = [{transform_indices = @transform_0, window_bounds = array<i64: 16, 2048>}, {pipeline_mode = #tpu.pipeline_mode<synchronous>, transform_indices = @transform_1, window_bounds = array<i64: 2048, 512>}, {pipeline_mode = #tpu.pipeline_mode<synchronous>, transform_indices = @transform_2, window_bounds = array<i64: 1, 512>}, {pipeline_mode = #tpu.pipeline_mode<synchronous>, transform_indices = @transform_3, window_bounds = array<i64: 1, 512>}, {pipeline_mode = #tpu.pipeline_mode<synchronous>, transform_indices = @transform_4, window_bounds = array<i64: 512, 512>}, {pipeline_mode = #tpu.pipeline_mode<synchronous>, transform_indices = @transform_5, window_bounds = array<i64: 1, 512>}, {pipeline_mode = #tpu.pipeline_mode<synchronous>, transform_indices = @transform_6, window_bounds = array<i64: 1, 512>}, {pipeline_mode = #tpu.pipeline_mode<synchronous>, transform_indices = @transform_7, window_bounds = array<i64: 512, 128>}, {pipeline_mode = #tpu.pipeline_mode<synchronous>, transform_indices = @transform_8, window_bounds = array<i64: 1, 128>}, {pipeline_mode = #tpu.pipeline_mode<synchronous>, transform_indices = @transform_9, window_bounds = array<i64: 1, 128>}, {transform_indices = @transform_10, window_bounds = array<i64: 16, 128>}]} {
    %c0 = arith.constant 0 : index
    %c0_0 = arith.constant 0 : index
    %0 = vector.load %arg1[%c0, %c0_0] : memref<16x2048xbf16, #tpu.memory_space<vmem>>, vector<16x2048xbf16>
    %c0_1 = arith.constant 0 : index
    %c0_2 = arith.constant 0 : index
    %1 = vector.load %arg2[%c0_1, %c0_2] : memref<2048x512xi8, #tpu.memory_space<vmem>>, vector<2048x512xi8>
    %2 = arith.sitofp %1 : vector<2048x512xi8> to vector<2048x512xbf16>
    %cst = arith.constant dense<0.000000e+00> : vector<16x512xf32>
    %3 = tpu.matmul %0, %2, %cst {dimension_numbers = #tpu.dot_dimension_numbers<[1], [0], [0], [1], [0, 0, 1, 1], [], []>} : vector<16x2048xbf16>, vector<2048x512xbf16>, vector<16x512xf32> -> vector<16x512xf32>
    %c0_3 = arith.constant 0 : index
    %c0_4 = arith.constant 0 : index
    %4 = vector.load %arg3[%c0_3, %c0_4] : memref<1x512xf32, #tpu.memory_space<vmem>>, vector<1x512xf32>
    %5 = vector.broadcast %4 : vector<1x512xf32> to vector<16x512xf32>
    %6 = arith.mulf %3, %5 : vector<16x512xf32>
    %c0_5 = arith.constant 0 : index
    %c0_6 = arith.constant 0 : index
    %7 = vector.load %arg4[%c0_5, %c0_6] : memref<1x512xf32, #tpu.memory_space<vmem>>, vector<1x512xf32>
    %8 = vector.broadcast %7 : vector<1x512xf32> to vector<16x512xf32>
    %9 = arith.addf %6, %8 : vector<16x512xf32>
    %cst_7 = arith.constant 0.000000e+00 : f32
    %10 = vector.broadcast %cst_7 : f32 to vector<16x512xf32>
    %11 = arith.maximumf %9, %10 : vector<16x512xf32>
    %12 = arith.truncf %11 : vector<16x512xf32> to vector<16x512xbf16>
    %c0_8 = arith.constant 0 : index
    %c0_9 = arith.constant 0 : index
    %13 = vector.load %arg5[%c0_8, %c0_9] : memref<512x512xi8, #tpu.memory_space<vmem>>, vector<512x512xi8>
    %14 = arith.sitofp %13 : vector<512x512xi8> to vector<512x512xbf16>
    %cst_10 = arith.constant dense<0.000000e+00> : vector<16x512xf32>
    %15 = tpu.matmul %12, %14, %cst_10 {dimension_numbers = #tpu.dot_dimension_numbers<[1], [0], [0], [1], [0, 0, 1, 1], [], []>} : vector<16x512xbf16>, vector<512x512xbf16>, vector<16x512xf32> -> vector<16x512xf32>
    %c0_11 = arith.constant 0 : index
    %c0_12 = arith.constant 0 : index
    %16 = vector.load %arg6[%c0_11, %c0_12] : memref<1x512xf32, #tpu.memory_space<vmem>>, vector<1x512xf32>
    %17 = vector.broadcast %16 : vector<1x512xf32> to vector<16x512xf32>
    %18 = arith.mulf %15, %17 : vector<16x512xf32>
    %c0_13 = arith.constant 0 : index
    %c0_14 = arith.constant 0 : index
    %19 = vector.load %arg7[%c0_13, %c0_14] : memref<1x512xf32, #tpu.memory_space<vmem>>, vector<1x512xf32>
    %20 = vector.broadcast %19 : vector<1x512xf32> to vector<16x512xf32>
    %21 = arith.addf %18, %20 : vector<16x512xf32>
    %cst_15 = arith.constant 0.000000e+00 : f32
    %22 = vector.broadcast %cst_15 : f32 to vector<16x512xf32>
    %23 = arith.maximumf %21, %22 : vector<16x512xf32>
    %24 = arith.truncf %23 : vector<16x512xf32> to vector<16x512xbf16>
    %c0_16 = arith.constant 0 : index
    %c0_17 = arith.constant 0 : index
    %25 = vector.load %arg8[%c0_16, %c0_17] : memref<512x128xi8, #tpu.memory_space<vmem>>, vector<512x128xi8>
    %26 = arith.sitofp %25 : vector<512x128xi8> to vector<512x128xbf16>
    %cst_18 = arith.constant dense<0.000000e+00> : vector<16x128xf32>
    %27 = tpu.matmul %24, %26, %cst_18 {dimension_numbers = #tpu.dot_dimension_numbers<[1], [0], [0], [1], [0, 0, 1, 1], [], []>} : vector<16x512xbf16>, vector<512x128xbf16>, vector<16x128xf32> -> vector<16x128xf32>
    %c0_19 = arith.constant 0 : index
    %c0_20 = arith.constant 0 : index
    %28 = vector.load %arg9[%c0_19, %c0_20] : memref<1x128xf32, #tpu.memory_space<vmem>>, vector<1x128xf32>
    %29 = vector.broadcast %28 : vector<1x128xf32> to vector<16x128xf32>
    %30 = arith.mulf %27, %29 : vector<16x128xf32>
    %c0_21 = arith.constant 0 : index
    %c0_22 = arith.constant 0 : index
    %31 = vector.load %arg10[%c0_21, %c0_22] : memref<1x128xf32, #tpu.memory_space<vmem>>, vector<1x128xf32>
    %32 = vector.broadcast %31 : vector<1x128xf32> to vector<16x128xf32>
    %33 = arith.addf %30, %32 : vector<16x128xf32>
    %34 = arith.negf %33 : vector<16x128xf32>
    %35 = math.exp %34 : vector<16x128xf32>
    %cst_23 = arith.constant 1.000000e+00 : f32
    %36 = vector.broadcast %cst_23 : f32 to vector<16x128xf32>
    %37 = arith.addf %36, %35 : vector<16x128xf32>
    %38 = arith.divf %36, %37 : vector<16x128xf32>
    %c0_24 = arith.constant 0 : index
    %c0_25 = arith.constant 0 : index
    %39 = vector.load %arg11[%c0_24, %c0_25] : memref<16x128xf32, #tpu.memory_space<vmem>>, vector<16x128xf32>
    tpu.vector_store %arg11[%c0_24, %c0_25], %38 {strides = array<i32>} : memref<16x128xf32, #tpu.memory_space<vmem>>, vector<16x128xf32>,
    return
  }
  func.func @transform_0(%arg0: i32) -> (i32, i32) {
    %c0_i32 = arith.constant 0 : i32
    %c0_i32_0 = arith.constant 0 : i32
    return %arg0, %c0_i32 : i32, i32
  }
  func.func @transform_1(%arg0: i32) -> (i32, i32) {
    %c0_i32 = arith.constant 0 : i32
    %c0_i32_0 = arith.constant 0 : i32
    %c0_i32_1 = arith.constant 0 : i32
    return %c0_i32, %c0_i32_0 : i32, i32
  }
  func.func @transform_2(%arg0: i32) -> (i32, i32) {
    %c0_i32 = arith.constant 0 : i32
    %c0_i32_0 = arith.constant 0 : i32
    %c0_i32_1 = arith.constant 0 : i32
    return %c0_i32, %c0_i32_0 : i32, i32
  }
  func.func @transform_3(%arg0: i32) -> (i32, i32) {
    %c0_i32 = arith.constant 0 : i32
    %c0_i32_0 = arith.constant 0 : i32
    %c0_i32_1 = arith.constant 0 : i32
    return %c0_i32, %c0_i32_0 : i32, i32
  }
  func.func @transform_4(%arg0: i32) -> (i32, i32) {
    %c0_i32 = arith.constant 0 : i32
    %c0_i32_0 = arith.constant 0 : i32
    %c0_i32_1 = arith.constant 0 : i32
    return %c0_i32, %c0_i32_0 : i32, i32
  }
  func.func @transform_5(%arg0: i32) -> (i32, i32) {
    %c0_i32 = arith.constant 0 : i32
    %c0_i32_0 = arith.constant 0 : i32
    %c0_i32_1 = arith.constant 0 : i32
    return %c0_i32, %c0_i32_0 : i32, i32
  }
  func.func @transform_6(%arg0: i32) -> (i32, i32) {
    %c0_i32 = arith.constant 0 : i32
    %c0_i32_0 = arith.constant 0 : i32
    %c0_i32_1 = arith.constant 0 : i32
    return %c0_i32, %c0_i32_0 : i32, i32
  }
  func.func @transform_7(%arg0: i32) -> (i32, i32) {
    %c0_i32 = arith.constant 0 : i32
    %c0_i32_0 = arith.constant 0 : i32
    %c0_i32_1 = arith.constant 0 : i32
    return %c0_i32, %c0_i32_0 : i32, i32
  }
  func.func @transform_8(%arg0: i32) -> (i32, i32) {
    %c0_i32 = arith.constant 0 : i32
    %c0_i32_0 = arith.constant 0 : i32
    %c0_i32_1 = arith.constant 0 : i32
    return %c0_i32, %c0_i32_0 : i32, i32
  }
  func.func @transform_9(%arg0: i32) -> (i32, i32) {
    %c0_i32 = arith.constant 0 : i32
    %c0_i32_0 = arith.constant 0 : i32
    %c0_i32_1 = arith.constant 0 : i32
    return %c0_i32, %c0_i32_0 : i32, i32
  }
  func.func @transform_10(%arg0: i32) -> (i32, i32) {
    %c0_i32 = arith.constant 0 : i32
    %c0_i32_0 = arith.constant 0 : i32
    return %arg0, %c0_i32 : i32, i32
  }
}

</mosaic_0001>

<llo_original>
// kernel: _lambda_.1
$region0: #{_lambda_.1}
  #allocation0 [shape = 'u32[]', space=smem, size = 0x4, offset = 0x4, fixed_abs, tag = 'smem constant byte address 0x4 - core index']
  #allocation1 [shape = 'u32[144,128]{1,0:T(1,128)}', space=vmem, size = 0x12000, scoped, tag = 'internal scratch']
  %s0 = inlined_call_operand.vmem [shape: bf16[16,2048], index: 0, kind: input, shape index: {}]
  %s1 = inlined_call_operand.vmem [shape: s8[2048,512], index: 1, kind: input, shape index: {}]
  %s2 = inlined_call_operand.vmem [shape: f32[1,512], index: 2, kind: input, shape index: {}]
  %s3 = inlined_call_operand.vmem [shape: f32[1,512], index: 3, kind: input, shape index: {}]
  %s4 = inlined_call_operand.hbm [shape: s8[512,512], index: 4, kind: input, shape index: {}]
  %s5 = inlined_call_operand.vmem [shape: f32[1,512], index: 5, kind: input, shape index: {}]
  %s6 = inlined_call_operand.vmem [shape: f32[1,512], index: 6, kind: input, shape index: {}]
  %s7 = inlined_call_operand.vmem [shape: s8[512,128], index: 7, kind: input, shape index: {}]
  %s8 = inlined_call_operand.vmem [shape: f32[1,128], index: 8, kind: input, shape index: {}]
  %s9 = inlined_call_operand.vmem [shape: f32[1,128], index: 9, kind: input, shape index: {}]
  %s10 = inlined_call_operand.vmem [shape: f32[16,128], index: 10, kind: output, shape index: {}]
  %s11 = sld [smem:[#allocation0]]
  $region54: #{_lambda_.1} parent=0
    _
  %s13 = ssub.s32 1, %s11
  %s14 = scalar_select 0, %s13, %s11
  $region1: #{_lambda_.1} parent=0
    #allocation2 [shape = 'u8[262144]{0}', space=vmem, size = 0x40000, scoped, tag = 'input window, operand 4, single buffered']
    #allocation3 [shape = 's32[1]{0}', space=sflag, size = 0x4, scoped, tag = 'scoped memory for _lambda_.1']
    %15 = vsyncpa [#allocation3], 0
    // Predicated region
    $region2: #{_lambda_.1} parent=1 // pred_check
      _
    $region3: #{_lambda_.1} parent=1 // pred_check_branch
      %17 = sbr.rel (0) target = $region5
    $region4: #{_lambda_.1} parent=1 // pred_region
      _
    $region5: #{_lambda_.1} parent=1 // pred_fallthru
      _
    // Predicated region
    $region6: #{_lambda_.1} parent=1 // pred_check
      _
    $region7: #{_lambda_.1} parent=1 // pred_check_branch
      %19 = sbr.rel (0) target = $region9
    $region8: #{_lambda_.1} parent=1 // pred_region
      _
    $region9: #{_lambda_.1} parent=1 // pred_fallthru
      _
    // Predicated region
    $region10: #{_lambda_.1} parent=1 // pred_check
      _
    $region11: #{_lambda_.1} parent=1 // pred_check_branch
      %21 = sbr.rel (0) target = $region13
    $region12: #{_lambda_.1} parent=1 // pred_region
      _
    $region13: #{_lambda_.1} parent=1 // pred_fallthru
      _
    // Predicated region
    $region14: #{_lambda_.1} parent=1 // pred_check
      _
    $region15: #{_lambda_.1} parent=1 // pred_check_branch
      %23 = sbr.rel (0) target = $region17
    $region16: #{_lambda_.1} parent=1 // pred_region
      _
    $region17: #{_lambda_.1} parent=1 // pred_fallthru
      _
    // Predicated region
    $region18: #{_lambda_.1} parent=1 // pred_check
      _
    $region19: #{_lambda_.1} parent=1 // pred_check_branch
      %25 = sbr.rel (0) target = $region21
    $region20: #{_lambda_.1} parent=1 // pred_region
      %s27 = ssub.s32 8192, 8192
      %28 = vsyncadd [#allocation3], %s27
      %s29 = sshll.u32 [#allocation2], 4
      %s30 = int_to_ptr.vmem [resolvable:$true] %s29
      %35 = dma.hbm_to_vmem [thread:$0]  %s4, 8192, %s30, [#allocation3], 512, 512, 32
    $region21: #{_lambda_.1} parent=1 // pred_fallthru
      _
    // Predicated region
    $region22: #{_lambda_.1} parent=1 // pred_check
      _
    $region23: #{_lambda_.1} parent=1 // pred_check_branch
      %37 = sbr.rel (0) target = $region25
    $region24: #{_lambda_.1} parent=1 // pred_region
      _
    $region25: #{_lambda_.1} parent=1 // pred_fallthru
      _
    // Predicated region
    $region26: #{_lambda_.1} parent=1 // pred_check
      _
    $region27: #{_lambda_.1} parent=1 // pred_check_branch
      %39 = sbr.rel (0) target = $region29
    $region28: #{_lambda_.1} parent=1 // pred_region
      _
    $region29: #{_lambda_.1} parent=1 // pred_fallthru
      _
    // Predicated region
    $region30: #{_lambda_.1} parent=1 // pred_check
      _
    $region31: #{_lambda_.1} parent=1 // pred_check_branch
      %41 = sbr.rel (0) target = $region33
    $region32: #{_lambda_.1} parent=1 // pred_region
      _
    $region33: #{_lambda_.1} parent=1 // pred_fallthru
      _
    // Predicated region
    $region34: #{_lambda_.1} parent=1 // pred_check
      _
    $region35: #{_lambda_.1} parent=1 // pred_check_branch
      %43 = sbr.rel (0) target = $region37
    $region36: #{_lambda_.1} parent=1 // pred_region
      _
    $region37: #{_lambda_.1} parent=1 // pred_fallthru
      _
    // Predicated region
    $region38: #{_lambda_.1} parent=1 // pred_check
      _
    $region39: #{_lambda_.1} parent=1 // pred_check_branch
      %45 = sbr.rel (0) target = $region41
    $region40: #{_lambda_.1} parent=1 // pred_region
      _
    $region41: #{_lambda_.1} parent=1 // pred_fallthru
      _
    // Predicated region
    $region42: #{_lambda_.1} parent=1 // pred_check
      _
    $region43: #{_lambda_.1} parent=1 // pred_check_branch
      %47 = sbr.rel (0) target = $region45
    $region44: #{_lambda_.1} parent=1 // pred_region
      %48 = dma.done [#allocation3], 8192
    $region45: #{_lambda_.1} parent=1 // pred_fallthru
      _
    %v50 = vld [vmem:[%s0] sm:$0xff]
    %v51 = vld [vmem:[%s0 + $0x8] sm:$0xff]
    %v52 = vld [vmem:[%s0 + $0x10] sm:$0xff]
    %v53 = vld [vmem:[%s0 + $0x18] sm:$0xff]
    %v54 = vld [vmem:[%s0 + $0x20] sm:$0xff]
    %v55 = vld [vmem:[%s0 + $0x28] sm:$0xff]
    %v56 = vld [vmem:[%s0 + $0x30] sm:$0xff]
    %v57 = vld [vmem:[%s0 + $0x38] sm:$0xff]
    %v58 = vld [vmem:[%s0 + $0x40] sm:$0xff]
    %v59 = vld [vmem:[%s0 + $0x48] sm:$0xff]
    %v60 = vld [vmem:[%s0 + $0x50] sm:$0xff]
    %v61 = vld [vmem:[%s0 + $0x58] sm:$0xff]
    %v62 = vld [vmem:[%s0 + $0x60] sm:$0xff]
    %v63 = vld [vmem:[%s0 + $0x68] sm:$0xff]
    %v64 = vld [vmem:[%s0 + $0x70] sm:$0xff]
    %v65 = vld [vmem:[%s0 + $0x78] sm:$0xff]
    %v66 = vld [vmem:[%s1] sm:$0xff]
    %v67 = vld [vmem:[%s1 + $0x8] sm:$0xff]
    %v68 = vld [vmem:[%s1 + $0x10] sm:$0xff]
    %v69 = vld [vmem:[%s1 + $0x18] sm:$0xff]
    %v70 = vld [vmem:[%s1 + $0x20] sm:$0xff]
    %v71 = vld [vmem:[%s1 + $0x28] sm:$0xff]
    %v72 = vld [vmem:[%s1 + $0x30] sm:$0xff]
    %v73 = vld [vmem:[%s1 + $0x38] sm:$0xff]
    %v74 = vld [vmem:[%s1 + $0x40] sm:$0xff]
    %v75 = vld [vmem:[%s1 + $0x48] sm:$0xff]
    %v76 = vld [vmem:[%s1 + $0x50] sm:$0xff]
    %v77 = vld [vmem:[%s1 + $0x58] sm:$0xff]
    %v78 = vld [vmem:[%s1 + $0x60] sm:$0xff]
    %v79 = vld [vmem:[%s1 + $0x68] sm:$0xff]
    %v80 = vld [vmem:[%s1 + $0x70] sm:$0xff]
    %v81 = vld [vmem:[%s1 + $0x78] sm:$0xff]
    %v82 = vld [vmem:[%s1 + $0x80] sm:$0xff]
    %v83 = vld [vmem:[%s1 + $0x88] sm:$0xff]
    %v84 = vld [vmem:[%s1 + $0x90] sm:$0xff]
    %v85 = vld [vmem:[%s1 + $0x98] sm:$0xff]
    %v86 = vld [vmem:[%s1 + $0xa0] sm:$0xff]
    %v87 = vld [vmem:[%s1 + $0xa8] sm:$0xff]
    %v88 = vld [vmem:[%s1 + $0xb0] sm:$0xff]
    %v89 = vld [vmem:[%s1 + $0xb8] sm:$0xff]
    %v90 = vld [vmem:[%s1 + $0xc0] sm:$0xff]
    %v91 = vld [vmem:[%s1 + $0xc8] sm:$0xff]
    %v92 = vld [vmem:[%s1 + $0xd0] sm:$0xff]
    %v93 = vld [vmem:[%s1 + $0xd8] sm:$0xff]
    %v94 = vld [vmem:[%s1 + $0xe0] sm:$0xff]
    %v95 = vld [vmem:[%s1 + $0xe8] sm:$0xff]
    %v96 = vld [vmem:[%s1 + $0xf0] sm:$0xff]
    %v97 = vld [vmem:[%s1 + $0xf8] sm:$0xff]
    %v98 = vld [vmem:[%s1 + $0x100] sm:$0xff]
    %v99 = vld [vmem:[%s1 + $0x108] sm:$0xff]
    %v100 = vld [vmem:[%s1 + $0x110] sm:$0xff]
    %v101 = vld [vmem:[%s1 + $0x118] sm:$0xff]
    %v102 = vld [vmem:[%s1 + $0x120] sm:$0xff]
    %v103 = vld [vmem:[%s1 + $0x128] sm:$0xff]
    %v104 = vld [vmem:[%s1 + $0x130] sm:$0xff]
    %v105 = vld [vmem:[%s1 + $0x138] sm:$0xff]
    %v106 = vld [vmem:[%s1 + $0x140] sm:$0xff]
    %v107 = vld [vmem:[%s1 + $0x148] sm:$0xff]
    %v108 = vld [vmem:[%s1 + $0x150] sm:$0xff]
    %v109 = vld [vmem:[%s1 + $0x158] sm:$0xff]
    %v110 = vld [vmem:[%s1 + $0x160] sm:$0xff]
    %v111 = vld [vmem:[%s1 + $0x168] sm:$0xff]
    %v112 = vld [vmem:[%s1 + $0x170] sm:$0xff]
    %v113 = vld [vmem:[%s1 + $0x178] sm:$0xff]
    %v114 = vld [vmem:[%s1 + $0x180] sm:$0xff]
    %v115 = vld [vmem:[%s1 + $0x188] sm:$0xff]
    %v116 = vld [vmem:[%s1 + $0x190] sm:$0xff]
    %v117 = vld [vmem:[%s1 + $0x198] sm:$0xff]
    %v118 = vld [vmem:[%s1 + $0x1a0] sm:$0xff]
    %v119 = vld [vmem:[%s1 + $0x1a8] sm:$0xff]
    %v120 = vld [vmem:[%s1 + $0x1b0] sm:$0xff]
    %v121 = vld [vmem:[%s1 + $0x1b8] sm:$0xff]
    %v122 = vld [vmem:[%s1 + $0x1c0] sm:$0xff]
    %v123 = vld [vmem:[%s1 + $0x1c8] sm:$0xff]
    %v124 = vld [vmem:[%s1 + $0x1d0] sm:$0xff]
    %v125 = vld [vmem:[%s1 + $0x1d8] sm:$0xff]
    %v126 = vld [vmem:[%s1 + $0x1e0] sm:$0xff]
    %v127 = vld [vmem:[%s1 + $0x1e8] sm:$0xff]
    %v128 = vld [vmem:[%s1 + $0x1f0] sm:$0xff]
    %v129 = vld [vmem:[%s1 + $0x1f8] sm:$0xff]
    %v130 = vld [vmem:[%s1 + $0x200] sm:$0xff]
    %v131 = vld [vmem:[%s1 + $0x208] sm:$0xff]
    %v132 = vld [vmem:[%s1 + $0x210] sm:$0xff]
    %v133 = vld [vmem:[%s1 + $0x218] sm:$0xff]
    %v134 = vld [vmem:[%s1 + $0x220] sm:$0xff]
    %v135 = vld [vmem:[%s1 + $0x228] sm:$0xff]
    %v136 = vld [vmem:[%s1 + $0x230] sm:$0xff]
    %v137 = vld [vmem:[%s1 + $0x238] sm:$0xff]
    %v138 = vld [vmem:[%s1 + $0x240] sm:$0xff]
    %v139 = vld [vmem:[%s1 + $0x248] sm:$0xff]
    %v140 = vld [vmem:[%s1 + $0x250] sm:$0xff]
    %v141 = vld [vmem:[%s1 + $0x258] sm:$0xff]
    %v142 = vld [vmem:[%s1 + $0x260] sm:$0xff]
    %v143 = vld [vmem:[%s1 + $0x268] sm:$0xff]
    %v144 = vld [vmem:[%s1 + $0x270] sm:$0xff]
    %v145 = vld [vmem:[%s1 + $0x278] sm:$0xff]
    %v146 = vld [vmem:[%s1 + $0x280] sm:$0xff]
    %v147 = vld [vmem:[%s1 + $0x288] sm:$0xff]
    %v148 = vld [vmem:[%s1 + $0x290] sm:$0xff]
    %v149 = vld [vmem:[%s1 + $0x298] sm:$0xff]
    %v150 = vld [vmem:[%s1 + $0x2a0] sm:$0xff]
    %v151 = vld [vmem:[%s1 + $0x2a8] sm:$0xff]
    %v152 = vld [vmem:[%s1 + $0x2b0] sm:$0xff]
    %v153 = vld [vmem:[%s1 + $0x2b8] sm:$0xff]
    %v154 = vld [vmem:[%s1 + $0x2c0] sm:$0xff]
    %v155 = vld [vmem:[%s1 + $0x2c8] sm:$0xff]
    %v156 = vld [vmem:[%s1 + $0x2d0] sm:$0xff]
    %v157 = vld [vmem:[%s1 + $0x2d8] sm:$0xff]
    %v158 = vld [vmem:[%s1 + $0x2e0] sm:$0xff]
    %v159 = vld [vmem:[%s1 + $0x2e8] sm:$0xff]
    %v160 = vld [vmem:[%s1 + $0x2f0] sm:$0xff]
    %v161 = vld [vmem:[%s1 + $0x2f8] sm:$0xff]
    %v162 = vld [vmem:[%s1 + $0x300] sm:$0xff]
    %v163 = vld [vmem:[%s1 + $0x308] sm:$0xff]
    %v164 = vld [vmem:[%s1 + $0x310] sm:$0xff]
    %v165 = vld [vmem:[%s1 + $0x318] sm:$0xff]
    %v166 = vld [vmem:[%s1 + $0x320] sm:$0xff]
    %v167 = vld [vmem:[%s1 + $0x328] sm:$0xff]
    %v168 = vld [vmem:[%s1 + $0x330] sm:$0xff]
    %v169 = vld [vmem:[%s1 + $0x338] sm:$0xff]
    %v170 = vld [vmem:[%s1 + $0x340] sm:$0xff]
    %v171 = vld [vmem:[%s1 + $0x348] sm:$0xff]
    %v172 = vld [vmem:[%s1 + $0x350] sm:$0xff]
    %v173 = vld [vmem:[%s1 + $0x358] sm:$0xff]
    %v174 = vld [vmem:[%s1 + $0x360] sm:$0xff]
    %v175 = vld [vmem:[%s1 + $0x368] sm:$0xff]
    %v176 = vld [vmem:[%s1 + $0x370] sm:$0xff]
    %v177 = vld [vmem:[%s1 + $0x378] sm:$0xff]
    %v178 = vld [vmem:[%s1 + $0x380] sm:$0xff]
    %v179 = vld [vmem:[%s1 + $0x388] sm:$0xff]
    %v180 = vld [vmem:[%s1 + $0x390] sm:$0xff]
    %v181 = vld [vmem:[%s1 + $0x398] sm:$0xff]
    %v182 = vld [vmem:[%s1 + $0x3a0] sm:$0xff]
    %v183 = vld [vmem:[%s1 + $0x3a8] sm:$0xff]
    %v184 = vld [vmem:[%s1 + $0x3b0] sm:$0xff]
    %v185 = vld [vmem:[%s1 + $0x3b8] sm:$0xff]
    %v186 = vld [vmem:[%s1 + $0x3c0] sm:$0xff]
    %v187 = vld [vmem:[%s1 + $0x3c8] sm:$0xff]
    %v188 = vld [vmem:[%s1 + $0x3d0] sm:$0xff]
    %v189 = vld [vmem:[%s1 + $0x3d8] sm:$0xff]
    %v190 = vld [vmem:[%s1 + $0x3e0] sm:$0xff]
    %v191 = vld [vmem:[%s1 + $0x3e8] sm:$0xff]
    %v192 = vld [vmem:[%s1 + $0x3f0] sm:$0xff]
    %v193 = vld [vmem:[%s1 + $0x3f8] sm:$0xff]
    %v194 = vld [vmem:[%s1 + $0x400] sm:$0xff]
    %v195 = vld [vmem:[%s1 + $0x408] sm:$0xff]
    %v196 = vld [vmem:[%s1 + $0x410] sm:$0xff]
    %v197 = vld [vmem:[%s1 + $0x418] sm:$0xff]
    %v198 = vld [vmem:[%s1 + $0x420] sm:$0xff]
    %v199 = vld [vmem:[%s1 + $0x428] sm:$0xff]
    %v200 = vld [vmem:[%s1 + $0x430] sm:$0xff]
    %v201 = vld [vmem:[%s1 + $0x438] sm:$0xff]
    %v202 = vld [vmem:[%s1 + $0x440] sm:$0xff]
    %v203 = vld [vmem:[%s1 + $0x448] sm:$0xff]
    %v204 = vld [vmem:[%s1 + $0x450] sm:$0xff]
    %v205 = vld [vmem:[%s1 + $0x458] sm:$0xff]
    %v206 = vld [vmem:[%s1 + $0x460] sm:$0xff]
    %v207 = vld [vmem:[%s1 + $0x468] sm:$0xff]
    %v208 = vld [vmem:[%s1 + $0x470] sm:$0xff]
    %v209 = vld [vmem:[%s1 + $0x478] sm:$0xff]
    %v210 = vld [vmem:[%s1 + $0x480] sm:$0xff]
    %v211 = vld [vmem:[%s1 + $0x488] sm:$0xff]
    %v212 = vld [vmem:[%s1 + $0x490] sm:$0xff]
    %v213 = vld [vmem:[%s1 + $0x498] sm:$0xff]
    %v214 = vld [vmem:[%s1 + $0x4a0] sm:$0xff]
    %v215 = vld [vmem:[%s1 + $0x4a8] sm:$0xff]
    %v216 = vld [vmem:[%s1 + $0x4b0] sm:$0xff]
    %v217 = vld [vmem:[%s1 + $0x4b8] sm:$0xff]
    %v218 = vld [vmem:[%s1 + $0x4c0] sm:$0xff]
    %v219 = vld [vmem:[%s1 + $0x4c8] sm:$0xff]
    %v220 = vld [vmem:[%s1 + $0x4d0] sm:$0xff]
    %v221 = vld [vmem:[%s1 + $0x4d8] sm:$0xff]
    %v222 = vld [vmem:[%s1 + $0x4e0] sm:$0xff]
    %v223 = vld [vmem:[%s1 + $0x4e8] sm:$0xff]
    %v224 = vld [vmem:[%s1 + $0x4f0] sm:$0xff]
    %v225 = vld [vmem:[%s1 + $0x4f8] sm:$0xff]
    %v226 = vld [vmem:[%s1 + $0x500] sm:$0xff]
    %v227 = vld [vmem:[%s1 + $0x508] sm:$0xff]
    %v228 = vld [vmem:[%s1 + $0x510] sm:$0xff]
    %v229 = vld [vmem:[%s1 + $0x518] sm:$0xff]
    %v230 = vld [vmem:[%s1 + $0x520] sm:$0xff]
    %v231 = vld [vmem:[%s1 + $0x528] sm:$0xff]
    %v232 = vld [vmem:[%s1 + $0x530] sm:$0xff]
    %v233 = vld [vmem:[%s1 + $0x538] sm:$0xff]
    %v234 = vld [vmem:[%s1 + $0x540] sm:$0xff]
    %v235 = vld [vmem:[%s1 + $0x548] sm:$0xff]
    %v236 = vld [vmem:[%s1 + $0x550] sm:$0xff]
    %v237 = vld [vmem:[%s1 + $0x558] sm:$0xff]
    %v238 = vld [vmem:[%s1 + $0x560] sm:$0xff]
    %v239 = vld [vmem:[%s1 + $0x568] sm:$0xff]
    %v240 = vld [vmem:[%s1 + $0x570] sm:$0xff]
    %v241 = vld [vmem:[%s1 + $0x578] sm:$0xff]
    %v242 = vld [vmem:[%s1 + $0x580] sm:$0xff]
    %v243 = vld [vmem:[%s1 + $0x588] sm:$0xff]
    %v244 = vld [vmem:[%s1 + $0x590] sm:$0xff]
    %v245 = vld [vmem:[%s1 + $0x598] sm:$0xff]
    %v246 = vld [vmem:[%s1 + $0x5a0] sm:$0xff]
    %v247 = vld [vmem:[%s1 + $0x5a8] sm:$0xff]
    %v248 = vld [vmem:[%s1 + $0x5b0] sm:$0xff]
    %v249 = vld [vmem:[%s1 + $0x5b8] sm:$0xff]
    %v250 = vld [vmem:[%s1 + $0x5c0] sm:$0xff]
    %v251 = vld [vmem:[%s1 + $0x5c8] sm:$0xff]
    %v252 = vld [vmem:[%s1 + $0x5d0] sm:$0xff]
    %v253 = vld [vmem:[%s1 + $0x5d8] sm:$0xff]
    %v254 = vld [vmem:[%s1 + $0x5e0] sm:$0xff]
    %v255 = vld [vmem:[%s1 + $0x5e8] sm:$0xff]
    %v256 = vld [vmem:[%s1 + $0x5f0] sm:$0xff]
    %v257 = vld [vmem:[%s1 + $0x5f8] sm:$0xff]
    %v258 = vld [vmem:[%s1 + $0x600] sm:$0xff]
    %v259 = vld [vmem:[%s1 + $0x608] sm:$0xff]
    %v260 = vld [vmem:[%s1 + $0x610] sm:$0xff]
    %v261 = vld [vmem:[%s1 + $0x618] sm:$0xff]
    %v262 = vld [vmem:[%s1 + $0x620] sm:$0xff]
    %v263 = vld [vmem:[%s1 + $0x628] sm:$0xff]
    %v264 = vld [vmem:[%s1 + $0x630] sm:$0xff]
    %v265 = vld [vmem:[%s1 + $0x638] sm:$0xff]
    %v266 = vld [vmem:[%s1 + $0x640] sm:$0xff]
    %v267 = vld [vmem:[%s1 + $0x648] sm:$0xff]
    %v268 = vld [vmem:[%s1 + $0x650] sm:$0xff]
    %v269 = vld [vmem:[%s1 + $0x658] sm:$0xff]
    %v270 = vld [vmem:[%s1 + $0x660] sm:$0xff]
    %v271 = vld [vmem:[%s1 + $0x668] sm:$0xff]
    %v272 = vld [vmem:[%s1 + $0x670] sm:$0xff]
    %v273 = vld [vmem:[%s1 + $0x678] sm:$0xff]
    %v274 = vld [vmem:[%s1 + $0x680] sm:$0xff]
    %v275 = vld [vmem:[%s1 + $0x688] sm:$0xff]
    %v276 = vld [vmem:[%s1 + $0x690] sm:$0xff]
    %v277 = vld [vmem:[%s1 + $0x698] sm:$0xff]
    %v278 = vld [vmem:[%s1 + $0x6a0] sm:$0xff]
    %v279 = vld [vmem:[%s1 + $0x6a8] sm:$0xff]
    %v280 = vld [vmem:[%s1 + $0x6b0] sm:$0xff]
    %v281 = vld [vmem:[%s1 + $0x6b8] sm:$0xff]
    %v282 = vld [vmem:[%s1 + $0x6c0] sm:$0xff]
    %v283 = vld [vmem:[%s1 + $0x6c8] sm:$0xff]
    %v284 = vld [vmem:[%s1 + $0x6d0] sm:$0xff]
    %v285 = vld [vmem:[%s1 + $0x6d8] sm:$0xff]
    %v286 = vld [vmem:[%s1 + $0x6e0] sm:$0xff]
    %v287 = vld [vmem:[%s1 + $0x6e8] sm:$0xff]
    %v288 = vld [vmem:[%s1 + $0x6f0] sm:$0xff]
    %v289 = vld [vmem:[%s1 + $0x6f8] sm:$0xff]
    %v290 = vld [vmem:[%s1 + $0x700] sm:$0xff]
    %v291 = vld [vmem:[%s1 + $0x708] sm:$0xff]
    %v292 = vld [vmem:[%s1 + $0x710] sm:$0xff]
    %v293 = vld [vmem:[%s1 + $0x718] sm:$0xff]
    %v294 = vld [vmem:[%s1 + $0x720] sm:$0xff]
    %v295 = vld [vmem:[%s1 + $0x728] sm:$0xff]
    %v296 = vld [vmem:[%s1 + $0x730] sm:$0xff]
    %v297 = vld [vmem:[%s1 + $0x738] sm:$0xff]
    %v298 = vld [vmem:[%s1 + $0x740] sm:$0xff]
    %v299 = vld [vmem:[%s1 + $0x748] sm:$0xff]
    %v300 = vld [vmem:[%s1 + $0x750] sm:$0xff]
    %v301 = vld [vmem:[%s1 + $0x758] sm:$0xff]
    %v302 = vld [vmem:[%s1 + $0x760] sm:$0xff]
    %v303 = vld [vmem:[%s1 + $0x768] sm:$0xff]
    %v304 = vld [vmem:[%s1 + $0x770] sm:$0xff]
    %v305 = vld [vmem:[%s1 + $0x778] sm:$0xff]
    %v306 = vld [vmem:[%s1 + $0x780] sm:$0xff]
    %v307 = vld [vmem:[%s1 + $0x788] sm:$0xff]
    %v308 = vld [vmem:[%s1 + $0x790] sm:$0xff]
    %v309 = vld [vmem:[%s1 + $0x798] sm:$0xff]
    %v310 = vld [vmem:[%s1 + $0x7a0] sm:$0xff]
    %v311 = vld [vmem:[%s1 + $0x7a8] sm:$0xff]
    %v312 = vld [vmem:[%s1 + $0x7b0] sm:$0xff]
    %v313 = vld [vmem:[%s1 + $0x7b8] sm:$0xff]
    %v314 = vld [vmem:[%s1 + $0x7c0] sm:$0xff]
    %v315 = vld [vmem:[%s1 + $0x7c8] sm:$0xff]
    %v316 = vld [vmem:[%s1 + $0x7d0] sm:$0xff]
    %v317 = vld [vmem:[%s1 + $0x7d8] sm:$0xff]
    %v318 = vld [vmem:[%s1 + $0x7e0] sm:$0xff]
    %v319 = vld [vmem:[%s1 + $0x7e8] sm:$0xff]
    %v320 = vld [vmem:[%s1 + $0x7f0] sm:$0xff]
    %v321 = vld [vmem:[%s1 + $0x7f8] sm:$0xff]
    %v322 = vunpack.c.l.s8.bf16 %v66
    %v323 = vunpack.c.l.s8.bf16 %v67
    %v324 = vunpack.c.l.s8.bf16 %v68
    %v325 = vunpack.c.l.s8.bf16 %v69
    %v326 = vunpack.c.h.s8.bf16 %v66
    %v327 = vunpack.c.h.s8.bf16 %v67
    %v328 = vunpack.c.h.s8.bf16 %v68
    %v329 = vunpack.c.h.s8.bf16 %v69
    %v330 = vunpack.c.l.s8.bf16 %v70
    %v331 = vunpack.c.l.s8.bf16 %v71
    %v332 = vunpack.c.l.s8.bf16 %v72
    %v333 = vunpack.c.l.s8.bf16 %v73
    %v334 = vunpack.c.h.s8.bf16 %v70
    %v335 = vunpack.c.h.s8.bf16 %v71
    %v336 = vunpack.c.h.s8.bf16 %v72
    %v337 = vunpack.c.h.s8.bf16 %v73
    %v338 = vunpack.c.l.s8.bf16 %v74
    %v339 = vunpack.c.l.s8.bf16 %v75
    %v340 = vunpack.c.l.s8.bf16 %v76
    %v341 = vunpack.c.l.s8.bf16 %v77
    %v342 = vunpack.c.h.s8.bf16 %v74
    %v343 = vunpack.c.h.s8.bf16 %v75
    %v344 = vunpack.c.h.s8.bf16 %v76
    %v345 = vunpack.c.h.s8.bf16 %v77
    %v346 = vunpack.c.l.s8.bf16 %v78
    %v347 = vunpack.c.l.s8.bf16 %v79
    %v348 = vunpack.c.l.s8.bf16 %v80
    %v349 = vunpack.c.l.s8.bf16 %v81
    %v350 = vunpack.c.h.s8.bf16 %v78
    %v351 = vunpack.c.h.s8.bf16 %v79
    %v352 = vunpack.c.h.s8.bf16 %v80
    %v353 = vunpack.c.h.s8.bf16 %v81
    %v354 = vunpack.c.l.s8.bf16 %v82
    %v355 = vunpack.c.l.s8.bf16 %v83
    %v356 = vunpack.c.l.s8.bf16 %v84
    %v357 = vunpack.c.l.s8.bf16 %v85
    %v358 = vunpack.c.h.s8.bf16 %v82
    %v359 = vunpack.c.h.s8.bf16 %v83
    %v360 = vunpack.c.h.s8.bf16 %v84
    %v361 = vunpack.c.h.s8.bf16 %v85
    %v362 = vunpack.c.l.s8.bf16 %v86
    %v363 = vunpack.c.l.s8.bf16 %v87
    %v364 = vunpack.c.l.s8.bf16 %v88
    %v365 = vunpack.c.l.s8.bf16 %v89
    %v366 = vunpack.c.h.s8.bf16 %v86
    %v367 = vunpack.c.h.s8.bf16 %v87
    %v368 = vunpack.c.h.s8.bf16 %v88
    %v369 = vunpack.c.h.s8.bf16 %v89
    %v370 = vunpack.c.l.s8.bf16 %v90
    %v371 = vunpack.c.l.s8.bf16 %v91
    %v372 = vunpack.c.l.s8.bf16 %v92
    %v373 = vunpack.c.l.s8.bf16 %v93
    %v374 = vunpack.c.h.s8.bf16 %v90
    %v375 = vunpack.c.h.s8.bf16 %v91
    %v376 = vunpack.c.h.s8.bf16 %v92
    %v377 = vunpack.c.h.s8.bf16 %v93
    %v378 = vunpack.c.l.s8.bf16 %v94
    %v379 = vunpack.c.l.s8.bf16 %v95
    %v380 = vunpack.c.l.s8.bf16 %v96
    %v381 = vunpack.c.l.s8.bf16 %v97
    %v382 = vunpack.c.h.s8.bf16 %v94
    %v383 = vunpack.c.h.s8.bf16 %v95
    %v384 = vunpack.c.h.s8.bf16 %v96
    %v385 = vunpack.c.h.s8.bf16 %v97
    %v386 = vunpack.c.l.s8.bf16 %v98
    %v387 = vunpack.c.l.s8.bf16 %v99
    %v388 = vunpack.c.l.s8.bf16 %v100
    %v389 = vunpack.c.l.s8.bf16 %v101
    %v390 = vunpack.c.h.s8.bf16 %v98
    %v391 = vunpack.c.h.s8.bf16 %v99
    %v392 = vunpack.c.h.s8.bf16 %v100
    %v393 = vunpack.c.h.s8.bf16 %v101
    %v394 = vunpack.c.l.s8.bf16 %v102
    %v395 = vunpack.c.l.s8.bf16 %v103
    %v396 = vunpack.c.l.s8.bf16 %v104
    %v397 = vunpack.c.l.s8.bf16 %v105
    %v398 = vunpack.c.h.s8.bf16 %v102
    %v399 = vunpack.c.h.s8.bf16 %v103
    %v400 = vunpack.c.h.s8.bf16 %v104
    %v401 = vunpack.c.h.s8.bf16 %v105
    %v402 = vunpack.c.l.s8.bf16 %v106
    %v403 = vunpack.c.l.s8.bf16 %v107
    %v404 = vunpack.c.l.s8.bf16 %v108
    %v405 = vunpack.c.l.s8.bf16 %v109
    %v406 = vunpack.c.h.s8.bf16 %v106
    %v407 = vunpack.c.h.s8.bf16 %v107
    %v408 = vunpack.c.h.s8.bf16 %v108
    %v409 = vunpack.c.h.s8.bf16 %v109
    %v410 = vunpack.c.l.s8.bf16 %v110
    %v411 = vunpack.c.l.s8.bf16 %v111
    %v412 = vunpack.c.l.s8.bf16 %v112
    %v413 = vunpack.c.l.s8.bf16 %v113
    %v414 = vunpack.c.h.s8.bf16 %v110
    %v415 = vunpack.c.h.s8.bf16 %v111
    %v416 = vunpack.c.h.s8.bf16 %v112
    %v417 = vunpack.c.h.s8.bf16 %v113
    %v418 = vunpack.c.l.s8.bf16 %v114
    %v419 = vunpack.c.l.s8.bf16 %v115
    %v420 = vunpack.c.l.s8.bf16 %v116
    %v421 = vunpack.c.l.s8.bf16 %v117
    %v422 = vunpack.c.h.s8.bf16 %v114
    %v423 = vunpack.c.h.s8.bf16 %v115
    %v424 = vunpack.c.h.s8.bf16 %v116
    %v425 = vunpack.c.h.s8.bf16 %v117
    %v426 = vunpack.c.l.s8.bf16 %v118
    %v427 = vunpack.c.l.s8.bf16 %v119
    %v428 = vunpack.c.l.s8.bf16 %v120
    %v429 = vunpack.c.l.s8.bf16 %v121
    %v430 = vunpack.c.h.s8.bf16 %v118
    %v431 = vunpack.c.h.s8.bf16 %v119
    %v432 = vunpack.c.h.s8.bf16 %v120
    %v433 = vunpack.c.h.s8.bf16 %v121
    %v434 = vunpack.c.l.s8.bf16 %v122
    %v435 = vunpack.c.l.s8.bf16 %v123
    %v436 = vunpack.c.l.s8.bf16 %v124
    %v437 = vunpack.c.l.s8.bf16 %v125
    %v438 = vunpack.c.h.s8.bf16 %v122
    %v439 = vunpack.c.h.s8.bf16 %v123
    %v440 = vunpack.c.h.s8.bf16 %v124
    %v441 = vunpack.c.h.s8.bf16 %v125
    %v442 = vunpack.c.l.s8.bf16 %v126
    %v443 = vunpack.c.l.s8.bf16 %v127
    %v444 = vunpack.c.l.s8.bf16 %v128
    %v445 = vunpack.c.l.s8.bf16 %v129
    %v446 = vunpack.c.h.s8.bf16 %v126
    %v447 = vunpack.c.h.s8.bf16 %v127
    %v448 = vunpack.c.h.s8.bf16 %v128
    %v449 = vunpack.c.h.s8.bf16 %v129
    %v450 = vunpack.c.l.s8.bf16 %v130
    %v451 = vunpack.c.l.s8.bf16 %v131
    %v452 = vunpack.c.l.s8.bf16 %v132
    %v453 = vunpack.c.l.s8.bf16 %v133
    %v454 = vunpack.c.h.s8.bf16 %v130
    %v455 = vunpack.c.h.s8.bf16 %v131
    %v456 = vunpack.c.h.s8.bf16 %v132
    %v457 = vunpack.c.h.s8.bf16 %v133
    %v458 = vunpack.c.l.s8.bf16 %v134
    %v459 = vunpack.c.l.s8.bf16 %v135
    %v460 = vunpack.c.l.s8.bf16 %v136
    %v461 = vunpack.c.l.s8.bf16 %v137
    %v462 = vunpack.c.h.s8.bf16 %v134
    %v463 = vunpack.c.h.s8.bf16 %v135
    %v464 = vunpack.c.h.s8.bf16 %v136
    %v465 = vunpack.c.h.s8.bf16 %v137
    %v466 = vunpack.c.l.s8.bf16 %v138
    %v467 = vunpack.c.l.s8.bf16 %v139
    %v468 = vunpack.c.l.s8.bf16 %v140
    %v469 = vunpack.c.l.s8.bf16 %v141
    %v470 = vunpack.c.h.s8.bf16 %v138
    %v471 = vunpack.c.h.s8.bf16 %v139
    %v472 = vunpack.c.h.s8.bf16 %v140
    %v473 = vunpack.c.h.s8.bf16 %v141
    %v474 = vunpack.c.l.s8.bf16 %v142
    %v475 = vunpack.c.l.s8.bf16 %v143
    %v476 = vunpack.c.l.s8.bf16 %v144
    %v477 = vunpack.c.l.s8.bf16 %v145
    %v478 = vunpack.c.h.s8.bf16 %v142
    %v479 = vunpack.c.h.s8.bf16 %v143
    %v480 = vunpack.c.h.s8.bf16 %v144
    %v481 = vunpack.c.h.s8.bf16 %v145
    %v482 = vunpack.c.l.s8.bf16 %v146
    %v483 = vunpack.c.l.s8.bf16 %v147
    %v484 = vunpack.c.l.s8.bf16 %v148
    %v485 = vunpack.c.l.s8.bf16 %v149
    %v486 = vunpack.c.h.s8.bf16 %v146
    %v487 = vunpack.c.h.s8.bf16 %v147
    %v488 = vunpack.c.h.s8.bf16 %v148
    %v489 = vunpack.c.h.s8.bf16 %v149
    %v490 = vunpack.c.l.s8.bf16 %v150
    %v491 = vunpack.c.l.s8.bf16 %v151
    %v492 = vunpack.c.l.s8.bf16 %v152
    %v493 = vunpack.c.l.s8.bf16 %v153
    %v494 = vunpack.c.h.s8.bf16 %v150
    %v495 = vunpack.c.h.s8.bf16 %v151
    %v496 = vunpack.c.h.s8.bf16 %v152
    %v497 = vunpack.c.h.s8.bf16 %v153
    %v498 = vunpack.c.l.s8.bf16 %v154
    %v499 = vunpack.c.l.s8.bf16 %v155
    %v500 = vunpack.c.l.s8.bf16 %v156
    %v501 = vunpack.c.l.s8.bf16 %v157
    %v502 = vunpack.c.h.s8.bf16 %v154
    %v503 = vunpack.c.h.s8.bf16 %v155
    %v504 = vunpack.c.h.s8.bf16 %v156
    %v505 = vunpack.c.h.s8.bf16 %v157
    %v506 = vunpack.c.l.s8.bf16 %v158
    %v507 = vunpack.c.l.s8.bf16 %v159
    %v508 = vunpack.c.l.s8.bf16 %v160
    %v509 = vunpack.c.l.s8.bf16 %v161
    %v510 = vunpack.c.h.s8.bf16 %v158
    %v511 = vunpack.c.h.s8.bf16 %v159
    %v512 = vunpack.c.h.s8.bf16 %v160
    %v513 = vunpack.c.h.s8.bf16 %v161
    %v514 = vunpack.c.l.s8.bf16 %v162
    %v515 = vunpack.c.l.s8.bf16 %v163
    %v516 = vunpack.c.l.s8.bf16 %v164
    %v517 = vunpack.c.l.s8.bf16 %v165
    %v518 = vunpack.c.h.s8.bf16 %v162
    %v519 = vunpack.c.h.s8.bf16 %v163
    %v520 = vunpack.c.h.s8.bf16 %v164
    %v521 = vunpack.c.h.s8.bf16 %v165
    %v522 = vunpack.c.l.s8.bf16 %v166
    %v523 = vunpack.c.l.s8.bf16 %v167
    %v524 = vunpack.c.l.s8.bf16 %v168
    %v525 = vunpack.c.l.s8.bf16 %v169
    %v526 = vunpack.c.h.s8.bf16 %v166
    %v527 = vunpack.c.h.s8.bf16 %v167
    %v528 = vunpack.c.h.s8.bf16 %v168
    %v529 = vunpack.c.h.s8.bf16 %v169
    %v530 = vunpack.c.l.s8.bf16 %v170
    %v531 = vunpack.c.l.s8.bf16 %v171
    %v532 = vunpack.c.l.s8.bf16 %v172
    %v533 = vunpack.c.l.s8.bf16 %v173
    %v534 = vunpack.c.h.s8.bf16 %v170
    %v535 = vunpack.c.h.s8.bf16 %v171
    %v536 = vunpack.c.h.s8.bf16 %v172
    %v537 = vunpack.c.h.s8.bf16 %v173
    %v538 = vunpack.c.l.s8.bf16 %v174
    %v539 = vunpack.c.l.s8.bf16 %v175
    %v540 = vunpack.c.l.s8.bf16 %v176
    %v541 = vunpack.c.l.s8.bf16 %v177
    %v542 = vunpack.c.h.s8.bf16 %v174
    %v543 = vunpack.c.h.s8.bf16 %v175
    %v544 = vunpack.c.h.s8.bf16 %v176
    %v545 = vunpack.c.h.s8.bf16 %v177
    %v546 = vunpack.c.l.s8.bf16 %v178
    %v547 = vunpack.c.l.s8.bf16 %v179
    %v548 = vunpack.c.l.s8.bf16 %v180
    %v549 = vunpack.c.l.s8.bf16 %v181
    %v550 = vunpack.c.h.s8.bf16 %v178
    %v551 = vunpack.c.h.s8.bf16 %v179
    %v552 = vunpack.c.h.s8.bf16 %v180
    %v553 = vunpack.c.h.s8.bf16 %v181
    %v554 = vunpack.c.l.s8.bf16 %v182
    %v555 = vunpack.c.l.s8.bf16 %v183
    %v556 = vunpack.c.l.s8.bf16 %v184
    %v557 = vunpack.c.l.s8.bf16 %v185
    %v558 = vunpack.c.h.s8.bf16 %v182
    %v559 = vunpack.c.h.s8.bf16 %v183
    %v560 = vunpack.c.h.s8.bf16 %v184
    %v561 = vunpack.c.h.s8.bf16 %v185
    %v562 = vunpack.c.l.s8.bf16 %v186
    %v563 = vunpack.c.l.s8.bf16 %v187
    %v564 = vunpack.c.l.s8.bf16 %v188
    %v565 = vunpack.c.l.s8.bf16 %v189
    %v566 = vunpack.c.h.s8.bf16 %v186
    %v567 = vunpack.c.h.s8.bf16 %v187
    %v568 = vunpack.c.h.s8.bf16 %v188
    %v569 = vunpack.c.h.s8.bf16 %v189
    %v570 = vunpack.c.l.s8.bf16 %v190
    %v571 = vunpack.c.l.s8.bf16 %v191
    %v572 = vunpack.c.l.s8.bf16 %v192
    %v573 = vunpack.c.l.s8.bf16 %v193
    %v574 = vunpack.c.h.s8.bf16 %v190
    %v575 = vunpack.c.h.s8.bf16 %v191
    %v576 = vunpack.c.h.s8.bf16 %v192
    %v577 = vunpack.c.h.s8.bf16 %v193
    %v578 = vunpack.c.l.s8.bf16 %v194
    %v579 = vunpack.c.l.s8.bf16 %v195
    %v580 = vunpack.c.l.s8.bf16 %v196
    %v581 = vunpack.c.l.s8.bf16 %v197
    %v582 = vunpack.c.h.s8.bf16 %v194
    %v583 = vunpack.c.h.s8.bf16 %v195
    %v584 = vunpack.c.h.s8.bf16 %v196
    %v585 = vunpack.c.h.s8.bf16 %v197
    %v586 = vunpack.c.l.s8.bf16 %v198
    %v587 = vunpack.c.l.s8.bf16 %v199
    %v588 = vunpack.c.l.s8.bf16 %v200
    %v589 = vunpack.c.l.s8.bf16 %v201
    %v590 = vunpack.c.h.s8.bf16 %v198
    %v591 = vunpack.c.h.s8.bf16 %v199
    %v592 = vunpack.c.h.s8.bf16 %v200
    %v593 = vunpack.c.h.s8.bf16 %v201
    %v594 = vunpack.c.l.s8.bf16 %v202
    %v595 = vunpack.c.l.s8.bf16 %v203
    %v596 = vunpack.c.l.s8.bf16 %v204
    %v597 = vunpack.c.l.s8.bf16 %v205
    %v598 = vunpack.c.h.s8.bf16 %v202
    %v599 = vunpack.c.h.s8.bf16 %v203
    %v600 = vunpack.c.h.s8.bf16 %v204
    %v601 = vunpack.c.h.s8.bf16 %v205
    %v602 = vunpack.c.l.s8.bf16 %v206
    %v603 = vunpack.c.l.s8.bf16 %v207
    %v604 = vunpack.c.l.s8.bf16 %v208
    %v605 = vunpack.c.l.s8.bf16 %v209
    %v606 = vunpack.c.h.s8.bf16 %v206
    %v607 = vunpack.c.h.s8.bf16 %v207
    %v608 = vunpack.c.h.s8.bf16 %v208
    %v609 = vunpack.c.h.s8.bf16 %v209
    %v610 = vunpack.c.l.s8.bf16 %v210
    %v611 = vunpack.c.l.s8.bf16 %v211
    %v612 = vunpack.c.l.s8.bf16 %v212
    %v613 = vunpack.c.l.s8.bf16 %v213
    %v614 = vunpack.c.h.s8.bf16 %v210
    %v615 = vunpack.c.h.s8.bf16 %v211
    %v616 = vunpack.c.h.s8.bf16 %v212
    %v617 = vunpack.c.h.s8.bf16 %v213
    %v618 = vunpack.c.l.s8.bf16 %v214
    %v619 = vunpack.c.l.s8.bf16 %v215
    %v620 = vunpack.c.l.s8.bf16 %v216
    %v621 = vunpack.c.l.s8.bf16 %v217
    %v622 = vunpack.c.h.s8.bf16 %v214
    %v623 = vunpack.c.h.s8.bf16 %v215
    %v624 = vunpack.c.h.s8.bf16 %v216
    %v625 = vunpack.c.h.s8.bf16 %v217
    %v626 = vunpack.c.l.s8.bf16 %v218
    %v627 = vunpack.c.l.s8.bf16 %v219
    %v628 = vunpack.c.l.s8.bf16 %v220
    %v629 = vunpack.c.l.s8.bf16 %v221
    %v630 = vunpack.c.h.s8.bf16 %v218
    %v631 = vunpack.c.h.s8.bf16 %v219
    %v632 = vunpack.c.h.s8.bf16 %v220
    %v633 = vunpack.c.h.s8.bf16 %v221
    %v634 = vunpack.c.l.s8.bf16 %v222
    %v635 = vunpack.c.l.s8.bf16 %v223
    %v636 = vunpack.c.l.s8.bf16 %v224
    %v637 = vunpack.c.l.s8.bf16 %v225
    %v638 = vunpack.c.h.s8.bf16 %v222
    %v639 = vunpack.c.h.s8.bf16 %v223
    %v640 = vunpack.c.h.s8.bf16 %v224
    %v641 = vunpack.c.h.s8.bf16 %v225
    %v642 = vunpack.c.l.s8.bf16 %v226
    %v643 = vunpack.c.l.s8.bf16 %v227
    %v644 = vunpack.c.l.s8.bf16 %v228
    %v645 = vunpack.c.l.s8.bf16 %v229
    %v646 = vunpack.c.h.s8.bf16 %v226
    %v647 = vunpack.c.h.s8.bf16 %v227
    %v648 = vunpack.c.h.s8.bf16 %v228
    %v649 = vunpack.c.h.s8.bf16 %v229
    %v650 = vunpack.c.l.s8.bf16 %v230
    %v651 = vunpack.c.l.s8.bf16 %v231
    %v652 = vunpack.c.l.s8.bf16 %v232
    %v653 = vunpack.c.l.s8.bf16 %v233
    %v654 = vunpack.c.h.s8.bf16 %v230
    %v655 = vunpack.c.h.s8.bf16 %v231
    %v656 = vunpack.c.h.s8.bf16 %v232
    %v657 = vunpack.c.h.s8.bf16 %v233
    %v658 = vunpack.c.l.s8.bf16 %v234
    %v659 = vunpack.c.l.s8.bf16 %v235
    %v660 = vunpack.c.l.s8.bf16 %v236
    %v661 = vunpack.c.l.s8.bf16 %v237
    %v662 = vunpack.c.h.s8.bf16 %v234
    %v663 = vunpack.c.h.s8.bf16 %v235
    %v664 = vunpack.c.h.s8.bf16 %v236
    %v665 = vunpack.c.h.s8.bf16 %v237
    %v666 = vunpack.c.l.s8.bf16 %v238
    %v667 = vunpack.c.l.s8.bf16 %v239
    %v668 = vunpack.c.l.s8.bf16 %v240
    %v669 = vunpack.c.l.s8.bf16 %v241
    %v670 = vunpack.c.h.s8.bf16 %v238
    %v671 = vunpack.c.h.s8.bf16 %v239
    %v672 = vunpack.c.h.s8.bf16 %v240
    %v673 = vunpack.c.h.s8.bf16 %v241
    %v674 = vunpack.c.l.s8.bf16 %v242
    %v675 = vunpack.c.l.s8.bf16 %v243
    %v676 = vunpack.c.l.s8.bf16 %v244
    %v677 = vunpack.c.l.s8.bf16 %v245
    %v678 = vunpack.c.h.s8.bf16 %v242
    %v679 = vunpack.c.h.s8.bf16 %v243
    %v680 = vunpack.c.h.s8.bf16 %v244
    %v681 = vunpack.c.h.s8.bf16 %v245
    %v682 = vunpack.c.l.s8.bf16 %v246
    %v683 = vunpack.c.l.s8.bf16 %v247
    %v684 = vunpack.c.l.s8.bf16 %v248
    %v685 = vunpack.c.l.s8.bf16 %v249
    %v686 = vunpack.c.h.s8.bf16 %v246
    %v687 = vunpack.c.h.s8.bf16 %v247
    %v688 = vunpack.c.h.s8.bf16 %v248
    %v689 = vunpack.c.h.s8.bf16 %v249
    %v690 = vunpack.c.l.s8.bf16 %v250
    %v691 = vunpack.c.l.s8.bf16 %v251
    %v692 = vunpack.c.l.s8.bf16 %v252
    %v693 = vunpack.c.l.s8.bf16 %v253
    %v694 = vunpack.c.h.s8.bf16 %v250
    %v695 = vunpack.c.h.s8.bf16 %v251
    %v696 = vunpack.c.h.s8.bf16 %v252
    %v697 = vunpack.c.h.s8.bf16 %v253
    %v698 = vunpack.c.l.s8.bf16 %v254
    %v699 = vunpack.c.l.s8.bf16 %v255
    %v700 = vunpack.c.l.s8.bf16 %v256
    %v701 = vunpack.c.l.s8.bf16 %v257
    %v702 = vunpack.c.h.s8.bf16 %v254
    %v703 = vunpack.c.h.s8.bf16 %v255
    %v704 = vunpack.c.h.s8.bf16 %v256
    %v705 = vunpack.c.h.s8.bf16 %v257
    %v706 = vunpack.c.l.s8.bf16 %v258
    %v707 = vunpack.c.l.s8.bf16 %v259
    %v708 = vunpack.c.l.s8.bf16 %v260
    %v709 = vunpack.c.l.s8.bf16 %v261
    %v710 = vunpack.c.h.s8.bf16 %v258
    %v711 = vunpack.c.h.s8.bf16 %v259
    %v712 = vunpack.c.h.s8.bf16 %v260
    %v713 = vunpack.c.h.s8.bf16 %v261
    %v714 = vunpack.c.l.s8.bf16 %v262
    %v715 = vunpack.c.l.s8.bf16 %v263
    %v716 = vunpack.c.l.s8.bf16 %v264
    %v717 = vunpack.c.l.s8.bf16 %v265
    %v718 = vunpack.c.h.s8.bf16 %v262
    %v719 = vunpack.c.h.s8.bf16 %v263
    %v720 = vunpack.c.h.s8.bf16 %v264
    %v721 = vunpack.c.h.s8.bf16 %v265
    %v722 = vunpack.c.l.s8.bf16 %v266
    %v723 = vunpack.c.l.s8.bf16 %v267
    %v724 = vunpack.c.l.s8.bf16 %v268
    %v725 = vunpack.c.l.s8.bf16 %v269
    %v726 = vunpack.c.h.s8.bf16 %v266
    %v727 = vunpack.c.h.s8.bf16 %v267
    %v728 = vunpack.c.h.s8.bf16 %v268
    %v729 = vunpack.c.h.s8.bf16 %v269
    %v730 = vunpack.c.l.s8.bf16 %v270
    %v731 = vunpack.c.l.s8.bf16 %v271
    %v732 = vunpack.c.l.s8.bf16 %v272
    %v733 = vunpack.c.l.s8.bf16 %v273
    %v734 = vunpack.c.h.s8.bf16 %v270
    %v735 = vunpack.c.h.s8.bf16 %v271
    %v736 = vunpack.c.h.s8.bf16 %v272
    %v737 = vunpack.c.h.s8.bf16 %v273
    %v738 = vunpack.c.l.s8.bf16 %v274
    %v739 = vunpack.c.l.s8.bf16 %v275
    %v740 = vunpack.c.l.s8.bf16 %v276
    %v741 = vunpack.c.l.s8.bf16 %v277
    %v742 = vunpack.c.h.s8.bf16 %v274
    %v743 = vunpack.c.h.s8.bf16 %v275
    %v744 = vunpack.c.h.s8.bf16 %v276
    %v745 = vunpack.c.h.s8.bf16 %v277
    %v746 = vunpack.c.l.s8.bf16 %v278
    %v747 = vunpack.c.l.s8.bf16 %v279
    %v748 = vunpack.c.l.s8.bf16 %v280
    %v749 = vunpack.c.l.s8.bf16 %v281
    %v750 = vunpack.c.h.s8.bf16 %v278
    %v751 = vunpack.c.h.s8.bf16 %v279
    %v752 = vunpack.c.h.s8.bf16 %v280
    %v753 = vunpack.c.h.s8.bf16 %v281
    %v754 = vunpack.c.l.s8.bf16 %v282
    %v755 = vunpack.c.l.s8.bf16 %v283
    %v756 = vunpack.c.l.s8.bf16 %v284
    %v757 = vunpack.c.l.s8.bf16 %v285
    %v758 = vunpack.c.h.s8.bf16 %v282
    %v759 = vunpack.c.h.s8.bf16 %v283
    %v760 = vunpack.c.h.s8.bf16 %v284
    %v761 = vunpack.c.h.s8.bf16 %v285
    %v762 = vunpack.c.l.s8.bf16 %v286
    %v763 = vunpack.c.l.s8.bf16 %v287
    %v764 = vunpack.c.l.s8.bf16 %v288
    %v765 = vunpack.c.l.s8.bf16 %v289
    %v766 = vunpack.c.h.s8.bf16 %v286
    %v767 = vunpack.c.h.s8.bf16 %v287
    %v768 = vunpack.c.h.s8.bf16 %v288
    %v769 = vunpack.c.h.s8.bf16 %v289
    %v770 = vunpack.c.l.s8.bf16 %v290
    %v771 = vunpack.c.l.s8.bf16 %v291
    %v772 = vunpack.c.l.s8.bf16 %v292
    %v773 = vunpack.c.l.s8.bf16 %v293
    %v774 = vunpack.c.h.s8.bf16 %v290
    %v775 = vunpack.c.h.s8.bf16 %v291
    %v776 = vunpack.c.h.s8.bf16 %v292
    %v777 = vunpack.c.h.s8.bf16 %v293
    %v778 = vunpack.c.l.s8.bf16 %v294
    %v779 = vunpack.c.l.s8.bf16 %v295
    %v780 = vunpack.c.l.s8.bf16 %v296
    %v781 = vunpack.c.l.s8.bf16 %v297
    %v782 = vunpack.c.h.s8.bf16 %v294
    %v783 = vunpack.c.h.s8.bf16 %v295
    %v784 = vunpack.c.h.s8.bf16 %v296
    %v785 = vunpack.c.h.s8.bf16 %v297
    %v786 = vunpack.c.l.s8.bf16 %v298
    %v787 = vunpack.c.l.s8.bf16 %v299
    %v788 = vunpack.c.l.s8.bf16 %v300
    %v789 = vunpack.c.l.s8.bf16 %v301
    %v790 = vunpack.c.h.s8.bf16 %v298
    %v791 = vunpack.c.h.s8.bf16 %v299
    %v792 = vunpack.c.h.s8.bf16 %v300
    %v793 = vunpack.c.h.s8.bf16 %v301
    %v794 = vunpack.c.l.s8.bf16 %v302
    %v795 = vunpack.c.l.s8.bf16 %v303
    %v796 = vunpack.c.l.s8.bf16 %v304
    %v797 = vunpack.c.l.s8.bf16 %v305
    %v798 = vunpack.c.h.s8.bf16 %v302
    %v799 = vunpack.c.h.s8.bf16 %v303
    %v800 = vunpack.c.h.s8.bf16 %v304
    %v801 = vunpack.c.h.s8.bf16 %v305
    %v802 = vunpack.c.l.s8.bf16 %v306
    %v803 = vunpack.c.l.s8.bf16 %v307
    %v804 = vunpack.c.l.s8.bf16 %v308
    %v805 = vunpack.c.l.s8.bf16 %v309
    %v806 = vunpack.c.h.s8.bf16 %v306
    %v807 = vunpack.c.h.s8.bf16 %v307
    %v808 = vunpack.c.h.s8.bf16 %v308
    %v809 = vunpack.c.h.s8.bf16 %v309
    %v810 = vunpack.c.l.s8.bf16 %v310
    %v811 = vunpack.c.l.s8.bf16 %v311
    %v812 = vunpack.c.l.s8.bf16 %v312
    %v813 = vunpack.c.l.s8.bf16 %v313
    %v814 = vunpack.c.h.s8.bf16 %v310
    %v815 = vunpack.c.h.s8.bf16 %v311
    %v816 = vunpack.c.h.s8.bf16 %v312
    %v817 = vunpack.c.h.s8.bf16 %v313
    %v818 = vunpack.c.l.s8.bf16 %v314
    %v819 = vunpack.c.l.s8.bf16 %v315
    %v820 = vunpack.c.l.s8.bf16 %v316
    %v821 = vunpack.c.l.s8.bf16 %v317
    %v822 = vunpack.c.h.s8.bf16 %v314
    %v823 = vunpack.c.h.s8.bf16 %v315
    %v824 = vunpack.c.h.s8.bf16 %v316
    %v825 = vunpack.c.h.s8.bf16 %v317
    %v826 = vunpack.c.l.s8.bf16 %v318
    %v827 = vunpack.c.l.s8.bf16 %v319
    %v828 = vunpack.c.l.s8.bf16 %v320
    %v829 = vunpack.c.l.s8.bf16 %v321
    %v830 = vunpack.c.h.s8.bf16 %v318
    %v831 = vunpack.c.h.s8.bf16 %v319
    %v832 = vunpack.c.h.s8.bf16 %v320
    %v833 = vunpack.c.h.s8.bf16 %v321
    %v850 = vunpack.c.l.b16 %v50
    %v851 = vunpack.c.h.b16 %v50
    %v852 = vunpack.c.l.b16 %v51
    %v853 = vunpack.c.h.b16 %v51
    %v854 = vunpack.c.l.b16 %v52
    %v855 = vunpack.c.h.b16 %v52
    %v856 = vunpack.c.l.b16 %v53
    %v857 = vunpack.c.h.b16 %v53
    %v858 = vunpack.c.l.b16 %v54
    %v859 = vunpack.c.h.b16 %v54
    %v860 = vunpack.c.l.b16 %v55
    %v861 = vunpack.c.h.b16 %v55
    %v862 = vunpack.c.l.b16 %v56
    %v863 = vunpack.c.h.b16 %v56
    %v864 = vunpack.c.l.b16 %v57
    %v865 = vunpack.c.h.b16 %v57
    %v866 = vunpack.c.l.b16 %v58
    %v867 = vunpack.c.h.b16 %v58
    %v868 = vunpack.c.l.b16 %v59
    %v869 = vunpack.c.h.b16 %v59
    %v870 = vunpack.c.l.b16 %v60
    %v871 = vunpack.c.h.b16 %v60
    %v872 = vunpack.c.l.b16 %v61
    %v873 = vunpack.c.h.b16 %v61
    %v874 = vunpack.c.l.b16 %v62
    %v875 = vunpack.c.h.b16 %v62
    %v876 = vunpack.c.l.b16 %v63
    %v877 = vunpack.c.h.b16 %v63
    %v878 = vunpack.c.l.b16 %v64
    %v879 = vunpack.c.h.b16 %v64
    %v880 = vunpack.c.l.b16 %v65
    %v881 = vunpack.c.h.b16 %v65
    %v882 = vpack.c.b16 %v866, %v850
    %v883 = vpack.c.b16 %v867, %v851
    %v884 = vpack.c.b16 %v868, %v852
    %v885 = vpack.c.b16 %v869, %v853
    %v886 = vpack.c.b16 %v870, %v854
    %v887 = vpack.c.b16 %v871, %v855
    %v888 = vpack.c.b16 %v872, %v856
    %v889 = vpack.c.b16 %v873, %v857
    %v890 = vpack.c.b16 %v874, %v858
    %v891 = vpack.c.b16 %v875, %v859
    %v892 = vpack.c.b16 %v876, %v860
    %v893 = vpack.c.b16 %v877, %v861
    %v894 = vpack.c.b16 %v878, %v862
    %v895 = vpack.c.b16 %v879, %v863
    %v896 = vpack.c.b16 %v880, %v864
    %v897 = vpack.c.b16 %v881, %v865
    %914 = vmatprep.subr.bf16.mxu0 %v323
    %915 = vmatpush1.bf16.msra.mxu0 %v322
    %916 = vmatprep.subr.bf16.mxu0 %v327
    %917 = vmatpush1.bf16.msra.mxu0 %v326
    %918 = vmatprep.subr.bf16.mxu0 %v331
    %919 = vmatpush1.bf16.msra.mxu0 %v330
    %920 = vmatprep.subr.bf16.mxu0 %v335
    %921 = vmatpush1.bf16.msra.mxu0 %v334
    %922 = vmatprep.subr.bf16.mxu0 %v339
    %923 = vmatpush1.bf16.msra.mxu0 %v338
    %924 = vmatprep.subr.bf16.mxu0 %v343
    %925 = vmatpush1.bf16.msra.mxu0 %v342
    %926 = vmatprep.subr.bf16.mxu0 %v347
    %927 = vmatpush1.bf16.msra.mxu0 %v346
    %928 = vmatprep.subr.bf16.mxu0 %v351
    %929 = vmatpush1.bf16.msra.mxu0 %v350
    %930 = vmatprep.subr.bf16.mxu0 %v355
    %931 = vmatpush1.bf16.msra.mxu0 %v354
    %932 = vmatprep.subr.bf16.mxu0 %v359
    %933 = vmatpush1.bf16.msra.mxu0 %v358
    %934 = vmatprep.subr.bf16.mxu0 %v363
    %935 = vmatpush1.bf16.msra.mxu0 %v362
    %936 = vmatprep.subr.bf16.mxu0 %v367
    %937 = vmatpush1.bf16.msra.mxu0 %v366
    %938 = vmatprep.subr.bf16.mxu0 %v371
    %939 = vmatpush1.bf16.msra.mxu0 %v370
    %940 = vmatprep.subr.bf16.mxu0 %v375
    %941 = vmatpush1.bf16.msra.mxu0 %v374
    %942 = vmatprep.subr.bf16.mxu0 %v379
    %943 = vmatpush1.bf16.msra.mxu0 %v378
    %944 = vmatprep.subr.bf16.mxu0 %v383
    %945 = vmatpush1.bf16.msra.mxu0 %v382
    %946 = vmatprep.mubr.bf16.mxu0 %v883
    %947 = vmatmul.mubr.bf16.gmra.mrb[0].mxu0 %v882
    %v948 = vpop.f32.mrb[0].mxu0
    %v949 = vadd.f32 0.0, %v948
    %v950 = vpop.f32.mrb[0].mxu0
    %v951 = vadd.f32 0.0, %v950
    %v952 = vpop.f32.mrb[0].mxu0
    %v953 = vadd.f32 0.0, %v952
    %v954 = vpop.f32.mrb[0].mxu0
    %v955 = vadd.f32 0.0, %v954
    %956 = vdwg.mxu0
    %957 = vmatprep.subr.bf16.mxu0 %v387
    %958 = vmatpush1.bf16.msra.mxu0 %v386
    %959 = vmatprep.subr.bf16.mxu0 %v391
    %960 = vmatpush1.bf16.msra.mxu0 %v390
    %961 = vmatprep.subr.bf16.mxu0 %v395
    %962 = vmatpush1.bf16.msra.mxu0 %v394
    %963 = vmatprep.subr.bf16.mxu0 %v399
    %964 = vmatpush1.bf16.msra.mxu0 %v398
    %965 = vmatprep.subr.bf16.mxu0 %v403
    %966 = vmatpush1.bf16.msra.mxu0 %v402
    %967 = vmatprep.subr.bf16.mxu0 %v407
    %968 = vmatpush1.bf16.msra.mxu0 %v406
    %969 = vmatprep.subr.bf16.mxu0 %v411
    %970 = vmatpush1.bf16.msra.mxu0 %v410
    %971 = vmatprep.subr.bf16.mxu0 %v415
    %972 = vmatpush1.bf16.msra.mxu0 %v414
    %973 = vmatprep.subr.bf16.mxu0 %v419
    %974 = vmatpush1.bf16.msra.mxu0 %v418
    %975 = vmatprep.subr.bf16.mxu0 %v423
    %976 = vmatpush1.bf16.msra.mxu0 %v422
    %977 = vmatprep.subr.bf16.mxu0 %v427
    %978 = vmatpush1.bf16.msra.mxu0 %v426
    %979 = vmatprep.subr.bf16.mxu0 %v431
    %980 = vmatpush1.bf16.msra.mxu0 %v430
    %981 = vmatprep.subr.bf16.mxu0 %v435
    %982 = vmatpush1.bf16.msra.mxu0 %v434
    %983 = vmatprep.subr.bf16.mxu0 %v439
    %984 = vmatpush1.bf16.msra.mxu0 %v438
    %985 = vmatprep.subr.bf16.mxu0 %v443
    %986 = vmatpush1.bf16.msra.mxu0 %v442
    %987 = vmatprep.subr.bf16.mxu0 %v447
    %988 = vmatpush1.bf16.msra.mxu0 %v446
    %989 = vmatprep.mubr.bf16.mxu0 %v885
    %990 = vmatmul.mubr.bf16.gmra.mrb[0].mxu0 %v884
    %v991 = vpop.f32.mrb[0].mxu0
    %v992 = vadd.f32 %v949, %v991
    %v993 = vpop.f32.mrb[0].mxu0
    %v994 = vadd.f32 %v951, %v993
    %v995 = vpop.f32.mrb[0].mxu0
    %v996 = vadd.f32 %v953, %v995
    %v997 = vpop.f32.mrb[0].mxu0
    %v998 = vadd.f32 %v955, %v997
    %999 = vdwg.mxu0
    %1000 = vmatprep.subr.bf16.mxu0 %v451
    %1001 = vmatpush1.bf16.msra.mxu0 %v450
    %1002 = vmatprep.subr.bf16.mxu0 %v455
    %1003 = vmatpush1.bf16.msra.mxu0 %v454
    %1004 = vmatprep.subr.bf16.mxu0 %v459
    %1005 = vmatpush1.bf16.msra.mxu0 %v458
    %1006 = vmatprep.subr.bf16.mxu0 %v463
    %1007 = vmatpush1.bf16.msra.mxu0 %v462
    %1008 = vmatprep.subr.bf16.mxu0 %v467
    %1009 = vmatpush1.bf16.msra.mxu0 %v466
    %1010 = vmatprep.subr.bf16.mxu0 %v471
    %1011 = vmatpush1.bf16.msra.mxu0 %v470
    %1012 = vmatprep.subr.bf16.mxu0 %v475
    %1013 = vmatpush1.bf16.msra.mxu0 %v474
    %1014 = vmatprep.subr.bf16.mxu0 %v479
    %1015 = vmatpush1.bf16.msra.mxu0 %v478
    %1016 = vmatprep.subr.bf16.mxu0 %v483
    %1017 = vmatpush1.bf16.msra.mxu0 %v482
    %1018 = vmatprep.subr.bf16.mxu0 %v487
    %1019 = vmatpush1.bf16.msra.mxu0 %v486
    %1020 = vmatprep.subr.bf16.mxu0 %v491
    %1021 = vmatpush1.bf16.msra.mxu0 %v490
    %1022 = vmatprep.subr.bf16.mxu0 %v495
    %1023 = vmatpush1.bf16.msra.mxu0 %v494
    %1024 = vmatprep.subr.bf16.mxu0 %v499
    %1025 = vmatpush1.bf16.msra.mxu0 %v498
    %1026 = vmatprep.subr.bf16.mxu0 %v503
    %1027 = vmatpush1.bf16.msra.mxu0 %v502
    %1028 = vmatprep.subr.bf16.mxu0 %v507
    %1029 = vmatpush1.bf16.msra.mxu0 %v506
    %1030 = vmatprep.subr.bf16.mxu0 %v511
    %1031 = vmatpush1.bf16.msra.mxu0 %v510
    %1032 = vmatprep.mubr.bf16.mxu0 %v887
    %1033 = vmatmul.mubr.bf16.gmra.mrb[0].mxu0 %v886
    %v1034 = vpop.f32.mrb[0].mxu0
    %v1035 = vadd.f32 %v992, %v1034
    %v1036 = vpop.f32.mrb[0].mxu0
    %v1037 = vadd.f32 %v994, %v1036
    %v1038 = vpop.f32.mrb[0].mxu0
    %v1039 = vadd.f32 %v996, %v1038
    %v1040 = vpop.f32.mrb[0].mxu0
    %v1041 = vadd.f32 %v998, %v1040
    %1042 = vdwg.mxu0
    %1043 = vmatprep.subr.bf16.mxu0 %v515
    %1044 = vmatpush1.bf16.msra.mxu0 %v514
    %1045 = vmatprep.subr.bf16.mxu0 %v519
    %1046 = vmatpush1.bf16.msra.mxu0 %v518
    %1047 = vmatprep.subr.bf16.mxu0 %v523
    %1048 = vmatpush1.bf16.msra.mxu0 %v522
    %1049 = vmatprep.subr.bf16.mxu0 %v527
    %1050 = vmatpush1.bf16.msra.mxu0 %v526
    %1051 = vmatprep.subr.bf16.mxu0 %v531
    %1052 = vmatpush1.bf16.msra.mxu0 %v530
    %1053 = vmatprep.subr.bf16.mxu0 %v535
    %1054 = vmatpush1.bf16.msra.mxu0 %v534
    %1055 = vmatprep.subr.bf16.mxu0 %v539
    %1056 = vmatpush1.bf16.msra.mxu0 %v538
    %1057 = vmatprep.subr.bf16.mxu0 %v543
    %1058 = vmatpush1.bf16.msra.mxu0 %v542
    %1059 = vmatprep.subr.bf16.mxu0 %v547
    %1060 = vmatpush1.bf16.msra.mxu0 %v546
    %1061 = vmatprep.subr.bf16.mxu0 %v551
    %1062 = vmatpush1.bf16.msra.mxu0 %v550
    %1063 = vmatprep.subr.bf16.mxu0 %v555
    %1064 = vmatpush1.bf16.msra.mxu0 %v554
    %1065 = vmatprep.subr.bf16.mxu0 %v559
    %1066 = vmatpush1.bf16.msra.mxu0 %v558
    %1067 = vmatprep.subr.bf16.mxu0 %v563
    %1068 = vmatpush1.bf16.msra.mxu0 %v562
    %1069 = vmatprep.subr.bf16.mxu0 %v567
    %1070 = vmatpush1.bf16.msra.mxu0 %v566
    %1071 = vmatprep.subr.bf16.mxu0 %v571
    %1072 = vmatpush1.bf16.msra.mxu0 %v570
    %1073 = vmatprep.subr.bf16.mxu0 %v575
    %1074 = vmatpush1.bf16.msra.mxu0 %v574
    %1075 = vmatprep.mubr.bf16.mxu0 %v889
    %1076 = vmatmul.mubr.bf16.gmra.mrb[0].mxu0 %v888
    %v1077 = vpop.f32.mrb[0].mxu0
    %v1078 = vadd.f32 %v1035, %v1077
    %v1079 = vpop.f32.mrb[0].mxu0
    %v1080 = vadd.f32 %v1037, %v1079
    %v1081 = vpop.f32.mrb[0].mxu0
    %v1082 = vadd.f32 %v1039, %v1081
    %v1083 = vpop.f32.mrb[0].mxu0
    %v1084 = vadd.f32 %v1041, %v1083
    %1085 = vdwg.mxu0
    %1086 = vmatprep.subr.bf16.mxu0 %v579
    %1087 = vmatpush1.bf16.msra.mxu0 %v578
    %1088 = vmatprep.subr.bf16.mxu0 %v583
    %1089 = vmatpush1.bf16.msra.mxu0 %v582
    %1090 = vmatprep.subr.bf16.mxu0 %v587
    %1091 = vmatpush1.bf16.msra.mxu0 %v586
    %1092 = vmatprep.subr.bf16.mxu0 %v591
    %1093 = vmatpush1.bf16.msra.mxu0 %v590
    %1094 = vmatprep.subr.bf16.mxu0 %v595
    %1095 = vmatpush1.bf16.msra.mxu0 %v594
    %1096 = vmatprep.subr.bf16.mxu0 %v599
    %1097 = vmatpush1.bf16.msra.mxu0 %v598
    %1098 = vmatprep.subr.bf16.mxu0 %v603
    %1099 = vmatpush1.bf16.msra.mxu0 %v602
    %1100 = vmatprep.subr.bf16.mxu0 %v607
    %1101 = vmatpush1.bf16.msra.mxu0 %v606
    %1102 = vmatprep.subr.bf16.mxu0 %v611
    %1103 = vmatpush1.bf16.msra.mxu0 %v610
    %1104 = vmatprep.subr.bf16.mxu0 %v615
    %1105 = vmatpush1.bf16.msra.mxu0 %v614
    %1106 = vmatprep.subr.bf16.mxu0 %v619
    %1107 = vmatpush1.bf16.msra.mxu0 %v618
    %1108 = vmatprep.subr.bf16.mxu0 %v623
    %1109 = vmatpush1.bf16.msra.mxu0 %v622
    %1110 = vmatprep.subr.bf16.mxu0 %v627
    %1111 = vmatpush1.bf16.msra.mxu0 %v626
    %1112 = vmatprep.subr.bf16.mxu0 %v631
    %1113 = vmatpush1.bf16.msra.mxu0 %v630
    %1114 = vmatprep.subr.bf16.mxu0 %v635
    %1115 = vmatpush1.bf16.msra.mxu0 %v634
    %1116 = vmatprep.subr.bf16.mxu0 %v639
    %1117 = vmatpush1.bf16.msra.mxu0 %v638
    %1118 = vmatprep.mubr.bf16.mxu0 %v891
    %1119 = vmatmul.mubr.bf16.gmra.mrb[0].mxu0 %v890
    %v1120 = vpop.f32.mrb[0].mxu0
    %v1121 = vadd.f32 %v1078, %v1120
    %v1122 = vpop.f32.mrb[0].mxu0
    %v1123 = vadd.f32 %v1080, %v1122
    %v1124 = vpop.f32.mrb[0].mxu0
    %v1125 = vadd.f32 %v1082, %v1124
    %v1126 = vpop.f32.mrb[0].mxu0
    %v1127 = vadd.f32 %v1084, %v1126
    %1128 = vdwg.mxu0
    %1129 = vmatprep.subr.bf16.mxu0 %v643
    %1130 = vmatpush1.bf16.msra.mxu0 %v642
    %1131 = vmatprep.subr.bf16.mxu0 %v647
    %1132 = vmatpush1.bf16.msra.mxu0 %v646
    %1133 = vmatprep.subr.bf16.mxu0 %v651
    %1134 = vmatpush1.bf16.msra.mxu0 %v650
    %1135 = vmatprep.subr.bf16.mxu0 %v655
    %1136 = vmatpush1.bf16.msra.mxu0 %v654
    %1137 = vmatprep.subr.bf16.mxu0 %v659
    %1138 = vmatpush1.bf16.msra.mxu0 %v658
    %1139 = vmatprep.subr.bf16.mxu0 %v663
    %1140 = vmatpush1.bf16.msra.mxu0 %v662
    %1141 = vmatprep.subr.bf16.mxu0 %v667
    %1142 = vmatpush1.bf16.msra.mxu0 %v666
    %1143 = vmatprep.subr.bf16.mxu0 %v671
    %1144 = vmatpush1.bf16.msra.mxu0 %v670
    %1145 = vmatprep.subr.bf16.mxu0 %v675
    %1146 = vmatpush1.bf16.msra.mxu0 %v674
    %1147 = vmatprep.subr.bf16.mxu0 %v679
    %1148 = vmatpush1.bf16.msra.mxu0 %v678
    %1149 = vmatprep.subr.bf16.mxu0 %v683
    %1150 = vmatpush1.bf16.msra.mxu0 %v682
    %1151 = vmatprep.subr.bf16.mxu0 %v687
    %1152 = vmatpush1.bf16.msra.mxu0 %v686
    %1153 = vmatprep.subr.bf16.mxu0 %v691
    %1154 = vmatpush1.bf16.msra.mxu0 %v690
    %1155 = vmatprep.subr.bf16.mxu0 %v695
    %1156 = vmatpush1.bf16.msra.mxu0 %v694
    %1157 = vmatprep.subr.bf16.mxu0 %v699
    %1158 = vmatpush1.bf16.msra.mxu0 %v698
    %1159 = vmatprep.subr.bf16.mxu0 %v703
    %1160 = vmatpush1.bf16.msra.mxu0 %v702
    %1161 = vmatprep.mubr.bf16.mxu0 %v893
    %1162 = vmatmul.mubr.bf16.gmra.mrb[0].mxu0 %v892
    %v1163 = vpop.f32.mrb[0].mxu0
    %v1164 = vadd.f32 %v1121, %v1163
    %v1165 = vpop.f32.mrb[0].mxu0
    %v1166 = vadd.f32 %v1123, %v1165
    %v1167 = vpop.f32.mrb[0].mxu0
    %v1168 = vadd.f32 %v1125, %v1167
    %v1169 = vpop.f32.mrb[0].mxu0
    %v1170 = vadd.f32 %v1127, %v1169
    %1171 = vdwg.mxu0
    %1172 = vmatprep.subr.bf16.mxu0 %v707
    %1173 = vmatpush1.bf16.msra.mxu0 %v706
    %1174 = vmatprep.subr.bf16.mxu0 %v711
    %1175 = vmatpush1.bf16.msra.mxu0 %v710
    %1176 = vmatprep.subr.bf16.mxu0 %v715
    %1177 = vmatpush1.bf16.msra.mxu0 %v714
    %1178 = vmatprep.subr.bf16.mxu0 %v719
    %1179 = vmatpush1.bf16.msra.mxu0 %v718
    %1180 = vmatprep.subr.bf16.mxu0 %v723
    %1181 = vmatpush1.bf16.msra.mxu0 %v722
    %1182 = vmatprep.subr.bf16.mxu0 %v727
    %1183 = vmatpush1.bf16.msra.mxu0 %v726
    %1184 = vmatprep.subr.bf16.mxu0 %v731
    %1185 = vmatpush1.bf16.msra.mxu0 %v730
    %1186 = vmatprep.subr.bf16.mxu0 %v735
    %1187 = vmatpush1.bf16.msra.mxu0 %v734
    %1188 = vmatprep.subr.bf16.mxu0 %v739
    %1189 = vmatpush1.bf16.msra.mxu0 %v738
    %1190 = vmatprep.subr.bf16.mxu0 %v743
    %1191 = vmatpush1.bf16.msra.mxu0 %v742
    %1192 = vmatprep.subr.bf16.mxu0 %v747
    %1193 = vmatpush1.bf16.msra.mxu0 %v746
    %1194 = vmatprep.subr.bf16.mxu0 %v751
    %1195 = vmatpush1.bf16.msra.mxu0 %v750
    %1196 = vmatprep.subr.bf16.mxu0 %v755
    %1197 = vmatpush1.bf16.msra.mxu0 %v754
    %1198 = vmatprep.subr.bf16.mxu0 %v759
    %1199 = vmatpush1.bf16.msra.mxu0 %v758
    %1200 = vmatprep.subr.bf16.mxu0 %v763
    %1201 = vmatpush1.bf16.msra.mxu0 %v762
    %1202 = vmatprep.subr.bf16.mxu0 %v767
    %1203 = vmatpush1.bf16.msra.mxu0 %v766
    %1204 = vmatprep.mubr.bf16.mxu0 %v895
    %1205 = vmatmul.mubr.bf16.gmra.mrb[0].mxu0 %v894
    %v1206 = vpop.f32.mrb[0].mxu0
    %v1207 = vadd.f32 %v1164, %v1206
    %v1208 = vpop.f32.mrb[0].mxu0
    %v1209 = vadd.f32 %v1166, %v1208
    %v1210 = vpop.f32.mrb[0].mxu0
    %v1211 = vadd.f32 %v1168, %v1210
    %v1212 = vpop.f32.mrb[0].mxu0
    %v1213 = vadd.f32 %v1170, %v1212
    %1214 = vdwg.mxu0
    %1215 = vmatprep.subr.bf16.mxu0 %v771
    %1216 = vmatpush1.bf16.msra.mxu0 %v770
    %1217 = vmatprep.subr.bf16.mxu0 %v775
    %1218 = vmatpush1.bf16.msra.mxu0 %v774
    %1219 = vmatprep.subr.bf16.mxu0 %v779
    %1220 = vmatpush1.bf16.msra.mxu0 %v778
    %1221 = vmatprep.subr.bf16.mxu0 %v783
    %1222 = vmatpush1.bf16.msra.mxu0 %v782
    %1223 = vmatprep.subr.bf16.mxu0 %v787
    %1224 = vmatpush1.bf16.msra.mxu0 %v786
    %1225 = vmatprep.subr.bf16.mxu0 %v791
    %1226 = vmatpush1.bf16.msra.mxu0 %v790
    %1227 = vmatprep.subr.bf16.mxu0 %v795
    %1228 = vmatpush1.bf16.msra.mxu0 %v794
    %1229 = vmatprep.subr.bf16.mxu0 %v799
    %1230 = vmatpush1.bf16.msra.mxu0 %v798
    %1231 = vmatprep.subr.bf16.mxu0 %v803
    %1232 = vmatpush1.bf16.msra.mxu0 %v802
    %1233 = vmatprep.subr.bf16.mxu0 %v807
    %1234 = vmatpush1.bf16.msra.mxu0 %v806
    %1235 = vmatprep.subr.bf16.mxu0 %v811
    %1236 = vmatpush1.bf16.msra.mxu0 %v810
    %1237 = vmatprep.subr.bf16.mxu0 %v815
    %1238 = vmatpush1.bf16.msra.mxu0 %v814
    %1239 = vmatprep.subr.bf16.mxu0 %v819
    %1240 = vmatpush1.bf16.msra.mxu0 %v818
    %1241 = vmatprep.subr.bf16.mxu0 %v823
    %1242 = vmatpush1.bf16.msra.mxu0 %v822
    %1243 = vmatprep.subr.bf16.mxu0 %v827
    %1244 = vmatpush1.bf16.msra.mxu0 %v826
    %1245 = vmatprep.subr.bf16.mxu0 %v831
    %1246 = vmatpush1.bf16.msra.mxu0 %v830
    %1247 = vmatprep.mubr.bf16.mxu0 %v897
    %1248 = vmatmul.mubr.bf16.gmra.mrb[0].mxu0 %v896
    %v1249 = vpop.f32.mrb[0].mxu0
    %v1250 = vadd.f32 %v1207, %v1249
    %v1251 = vpop.f32.mrb[0].mxu0
    %v1252 = vadd.f32 %v1209, %v1251
    %v1253 = vpop.f32.mrb[0].mxu0
    %v1254 = vadd.f32 %v1211, %v1253
    %v1255 = vpop.f32.mrb[0].mxu0
    %v1256 = vadd.f32 %v1213, %v1255
    %1257 = vdwg.mxu0
    %1258 = vmatprep.subr.bf16.mxu0 %v325
    %1259 = vmatpush1.bf16.msra.mxu0 %v324
    %1260 = vmatprep.subr.bf16.mxu0 %v329
    %1261 = vmatpush1.bf16.msra.mxu0 %v328
    %1262 = vmatprep.subr.bf16.mxu0 %v333
    %1263 = vmatpush1.bf16.msra.mxu0 %v332
    %1264 = vmatprep.subr.bf16.mxu0 %v337
    %1265 = vmatpush1.bf16.msra.mxu0 %v336
    %1266 = vmatprep.subr.bf16.mxu0 %v341
    %1267 = vmatpush1.bf16.msra.mxu0 %v340
    %1268 = vmatprep.subr.bf16.mxu0 %v345
    %1269 = vmatpush1.bf16.msra.mxu0 %v344
    %1270 = vmatprep.subr.bf16.mxu0 %v349
    %1271 = vmatpush1.bf16.msra.mxu0 %v348
    %1272 = vmatprep.subr.bf16.mxu0 %v353
    %1273 = vmatpush1.bf16.msra.mxu0 %v352
    %1274 = vmatprep.subr.bf16.mxu0 %v357
    %1275 = vmatpush1.bf16.msra.mxu0 %v356
    %1276 = vmatprep.subr.bf16.mxu0 %v361
    %1277 = vmatpush1.bf16.msra.mxu0 %v360
    %1278 = vmatprep.subr.bf16.mxu0 %v365
    %1279 = vmatpush1.bf16.msra.mxu0 %v364
    %1280 = vmatprep.subr.bf16.mxu0 %v369
    %1281 = vmatpush1.bf16.msra.mxu0 %v368
    %1282 = vmatprep.subr.bf16.mxu0 %v373
    %1283 = vmatpush1.bf16.msra.mxu0 %v372
    %1284 = vmatprep.subr.bf16.mxu0 %v377
    %1285 = vmatpush1.bf16.msra.mxu0 %v376
    %1286 = vmatprep.subr.bf16.mxu0 %v381
    %1287 = vmatpush1.bf16.msra.mxu0 %v380
    %1288 = vmatprep.subr.bf16.mxu0 %v385
    %1289 = vmatpush1.bf16.msra.mxu0 %v384
    %1290 = vmatprep.mubr.bf16.mxu0 %v883
    %1291 = vmatmul.mubr.bf16.gmra.mrb[0].mxu0 %v882
    %v1292 = vpop.f32.mrb[0].mxu0
    %v1293 = vadd.f32 0.0, %v1292
    %v1294 = vpop.f32.mrb[0].mxu0
    %v1295 = vadd.f32 0.0, %v1294
    %v1296 = vpop.f32.mrb[0].mxu0
    %v1297 = vadd.f32 0.0, %v1296
    %v1298 = vpop.f32.mrb[0].mxu0
    %v1299 = vadd.f32 0.0, %v1298
    %1300 = vdwg.mxu0
    %1301 = vmatprep.subr.bf16.mxu0 %v389
    %1302 = vmatpush1.bf16.msra.mxu0 %v388
    %1303 = vmatprep.subr.bf16.mxu0 %v393
    %1304 = vmatpush1.bf16.msra.mxu0 %v392
    %1305 = vmatprep.subr.bf16.mxu0 %v397
    %1306 = vmatpush1.bf16.msra.mxu0 %v396
    %1307 = vmatprep.subr.bf16.mxu0 %v401
    %1308 = vmatpush1.bf16.msra.mxu0 %v400
    %1309 = vmatprep.subr.bf16.mxu0 %v405
    %1310 = vmatpush1.bf16.msra.mxu0 %v404
    %1311 = vmatprep.subr.bf16.mxu0 %v409
    %1312 = vmatpush1.bf16.msra.mxu0 %v408
    %1313 = vmatprep.subr.bf16.mxu0 %v413
    %1314 = vmatpush1.bf16.msra.mxu0 %v412
    %1315 = vmatprep.subr.bf16.mxu0 %v417
    %1316 = vmatpush1.bf16.msra.mxu0 %v416
    %1317 = vmatprep.subr.bf16.mxu0 %v421
    %1318 = vmatpush1.bf16.msra.mxu0 %v420
    %1319 = vmatprep.subr.bf16.mxu0 %v425
    %1320 = vmatpush1.bf16.msra.mxu0 %v424
    %1321 = vmatprep.subr.bf16.mxu0 %v429
    %1322 = vmatpush1.bf16.msra.mxu0 %v428
    %1323 = vmatprep.subr.bf16.mxu0 %v433
    %1324 = vmatpush1.bf16.msra.mxu0 %v432
    %1325 = vmatprep.subr.bf16.mxu0 %v437
    %1326 = vmatpush1.bf16.msra.mxu0 %v436
    %1327 = vmatprep.subr.bf16.mxu0 %v441
    %1328 = vmatpush1.bf16.msra.mxu0 %v440
    %1329 = vmatprep.subr.bf16.mxu0 %v445
    %1330 = vmatpush1.bf16.msra.mxu0 %v444
    %1331 = vmatprep.subr.bf16.mxu0 %v449
    %1332 = vmatpush1.bf16.msra.mxu0 %v448
    %1333 = vmatprep.mubr.bf16.mxu0 %v885
    %1334 = vmatmul.mubr.bf16.gmra.mrb[0].mxu0 %v884
    %v1335 = vpop.f32.mrb[0].mxu0
    %v1336 = vadd.f32 %v1293, %v1335
    %v1337 = vpop.f32.mrb[0].mxu0
    %v1338 = vadd.f32 %v1295, %v1337
    %v1339 = vpop.f32.mrb[0].mxu0
    %v1340 = vadd.f32 %v1297, %v1339
    %v1341 = vpop.f32.mrb[0].mxu0
    %v1342 = vadd.f32 %v1299, %v1341
    %1343 = vdwg.mxu0
    %1344 = vmatprep.subr.bf16.mxu0 %v453
    %1345 = vmatpush1.bf16.msra.mxu0 %v452
    %1346 = vmatprep.subr.bf16.mxu0 %v457
    %1347 = vmatpush1.bf16.msra.mxu0 %v456
    %1348 = vmatprep.subr.bf16.mxu0 %v461
    %1349 = vmatpush1.bf16.msra.mxu0 %v460
    %1350 = vmatprep.subr.bf16.mxu0 %v465
    %1351 = vmatpush1.bf16.msra.mxu0 %v464
    %1352 = vmatprep.subr.bf16.mxu0 %v469
    %1353 = vmatpush1.bf16.msra.mxu0 %v468
    %1354 = vmatprep.subr.bf16.mxu0 %v473
    %1355 = vmatpush1.bf16.msra.mxu0 %v472
    %1356 = vmatprep.subr.bf16.mxu0 %v477
    %1357 = vmatpush1.bf16.msra.mxu0 %v476
    %1358 = vmatprep.subr.bf16.mxu0 %v481
    %1359 = vmatpush1.bf16.msra.mxu0 %v480
    %1360 = vmatprep.subr.bf16.mxu0 %v485
    %1361 = vmatpush1.bf16.msra.mxu0 %v484
    %1362 = vmatprep.subr.bf16.mxu0 %v489
    %1363 = vmatpush1.bf16.msra.mxu0 %v488
    %1364 = vmatprep.subr.bf16.mxu0 %v493
    %1365 = vmatpush1.bf16.msra.mxu0 %v492
    %1366 = vmatprep.subr.bf16.mxu0 %v497
    %1367 = vmatpush1.bf16.msra.mxu0 %v496
    %1368 = vmatprep.subr.bf16.mxu0 %v501
    %1369 = vmatpush1.bf16.msra.mxu0 %v500
    %1370 = vmatprep.subr.bf16.mxu0 %v505
    %1371 = vmatpush1.bf16.msra.mxu0 %v504
    %1372 = vmatprep.subr.bf16.mxu0 %v509
    %1373 = vmatpush1.bf16.msra.mxu0 %v508
    %1374 = vmatprep.subr.bf16.mxu0 %v513
    %1375 = vmatpush1.bf16.msra.mxu0 %v512
    %1376 = vmatprep.mubr.bf16.mxu0 %v887
    %1377 = vmatmul.mubr.bf16.gmra.mrb[0].mxu0 %v886
    %v1378 = vpop.f32.mrb[0].mxu0
    %v1379 = vadd.f32 %v1336, %v1378
    %v1380 = vpop.f32.mrb[0].mxu0
    %v1381 = vadd.f32 %v1338, %v1380
    %v1382 = vpop.f32.mrb[0].mxu0
    %v1383 = vadd.f32 %v1340, %v1382
    %v1384 = vpop.f32.mrb[0].mxu0
    %v1385 = vadd.f32 %v1342, %v1384
    %1386 = vdwg.mxu0
    %1387 = vmatprep.subr.bf16.mxu0 %v517
    %1388 = vmatpush1.bf16.msra.mxu0 %v516
    %1389 = vmatprep.subr.bf16.mxu0 %v521
    %1390 = vmatpush1.bf16.msra.mxu0 %v520
    %1391 = vmatprep.subr.bf16.mxu0 %v525
    %1392 = vmatpush1.bf16.msra.mxu0 %v524
    %1393 = vmatprep.subr.bf16.mxu0 %v529
    %1394 = vmatpush1.bf16.msra.mxu0 %v528
    %1395 = vmatprep.subr.bf16.mxu0 %v533
    %1396 = vmatpush1.bf16.msra.mxu0 %v532
    %1397 = vmatprep.subr.bf16.mxu0 %v537
    %1398 = vmatpush1.bf16.msra.mxu0 %v536
    %1399 = vmatprep.subr.bf16.mxu0 %v541
    %1400 = vmatpush1.bf16.msra.mxu0 %v540
    %1401 = vmatprep.subr.bf16.mxu0 %v545
    %1402 = vmatpush1.bf16.msra.mxu0 %v544
    %1403 = vmatprep.subr.bf16.mxu0 %v549
    %1404 = vmatpush1.bf16.msra.mxu0 %v548
    %1405 = vmatprep.subr.bf16.mxu0 %v553
    %1406 = vmatpush1.bf16.msra.mxu0 %v552
    %1407 = vmatprep.subr.bf16.mxu0 %v557
    %1408 = vmatpush1.bf16.msra.mxu0 %v556
    %1409 = vmatprep.subr.bf16.mxu0 %v561
    %1410 = vmatpush1.bf16.msra.mxu0 %v560
    %1411 = vmatprep.subr.bf16.mxu0 %v565
    %1412 = vmatpush1.bf16.msra.mxu0 %v564
    %1413 = vmatprep.subr.bf16.mxu0 %v569
    %1414 = vmatpush1.bf16.msra.mxu0 %v568
    %1415 = vmatprep.subr.bf16.mxu0 %v573
    %1416 = vmatpush1.bf16.msra.mxu0 %v572
    %1417 = vmatprep.subr.bf16.mxu0 %v577
    %1418 = vmatpush1.bf16.msra.mxu0 %v576
    %1419 = vmatprep.mubr.bf16.mxu0 %v889
    %1420 = vmatmul.mubr.bf16.gmra.mrb[0].mxu0 %v888
    %v1421 = vpop.f32.mrb[0].mxu0
    %v1422 = vadd.f32 %v1379, %v1421
    %v1423 = vpop.f32.mrb[0].mxu0
    %v1424 = vadd.f32 %v1381, %v1423
    %v1425 = vpop.f32.mrb[0].mxu0
    %v1426 = vadd.f32 %v1383, %v1425
    %v1427 = vpop.f32.mrb[0].mxu0
    %v1428 = vadd.f32 %v1385, %v1427
    %1429 = vdwg.mxu0
    %1430 = vmatprep.subr.bf16.mxu0 %v581
    %1431 = vmatpush1.bf16.msra.mxu0 %v580
    %1432 = vmatprep.subr.bf16.mxu0 %v585
    %1433 = vmatpush1.bf16.msra.mxu0 %v584
    %1434 = vmatprep.subr.bf16.mxu0 %v589
    %1435 = vmatpush1.bf16.msra.mxu0 %v588
    %1436 = vmatprep.subr.bf16.mxu0 %v593
    %1437 = vmatpush1.bf16.msra.mxu0 %v592
    %1438 = vmatprep.subr.bf16.mxu0 %v597
    %1439 = vmatpush1.bf16.msra.mxu0 %v596
    %1440 = vmatprep.subr.bf16.mxu0 %v601
    %1441 = vmatpush1.bf16.msra.mxu0 %v600
    %1442 = vmatprep.subr.bf16.mxu0 %v605
    %1443 = vmatpush1.bf16.msra.mxu0 %v604
    %1444 = vmatprep.subr.bf16.mxu0 %v609
    %1445 = vmatpush1.bf16.msra.mxu0 %v608
    %1446 = vmatprep.subr.bf16.mxu0 %v613
    %1447 = vmatpush1.bf16.msra.mxu0 %v612
    %1448 = vmatprep.subr.bf16.mxu0 %v617
    %1449 = vmatpush1.bf16.msra.mxu0 %v616
    %1450 = vmatprep.subr.bf16.mxu0 %v621
    %1451 = vmatpush1.bf16.msra.mxu0 %v620
    %1452 = vmatprep.subr.bf16.mxu0 %v625
    %1453 = vmatpush1.bf16.msra.mxu0 %v624
    %1454 = vmatprep.subr.bf16.mxu0 %v629
    %1455 = vmatpush1.bf16.msra.mxu0 %v628
    %1456 = vmatprep.subr.bf16.mxu0 %v633
    %1457 = vmatpush1.bf16.msra.mxu0 %v632
    %1458 = vmatprep.subr.bf16.mxu0 %v637
    %1459 = vmatpush1.bf16.msra.mxu0 %v636
    %1460 = vmatprep.subr.bf16.mxu0 %v641
    %1461 = vmatpush1.bf16.msra.mxu0 %v640
    %1462 = vmatprep.mubr.bf16.mxu0 %v891
    %1463 = vmatmul.mubr.bf16.gmra.mrb[0].mxu0 %v890
    %v1464 = vpop.f32.mrb[0].mxu0
    %v1465 = vadd.f32 %v1422, %v1464
    %v1466 = vpop.f32.mrb[0].mxu0
    %v1467 = vadd.f32 %v1424, %v1466
    %v1468 = vpop.f32.mrb[0].mxu0
    %v1469 = vadd.f32 %v1426, %v1468
    %v1470 = vpop.f32.mrb[0].mxu0
    %v1471 = vadd.f32 %v1428, %v1470
    %1472 = vdwg.mxu0
    %1473 = vmatprep.subr.bf16.mxu0 %v645
    %1474 = vmatpush1.bf16.msra.mxu0 %v644
    %1475 = vmatprep.subr.bf16.mxu0 %v649
    %1476 = vmatpush1.bf16.msra.mxu0 %v648
    %1477 = vmatprep.subr.bf16.mxu0 %v653
    %1478 = vmatpush1.bf16.msra.mxu0 %v652
    %1479 = vmatprep.subr.bf16.mxu0 %v657
    %1480 = vmatpush1.bf16.msra.mxu0 %v656
    %1481 = vmatprep.subr.bf16.mxu0 %v661
    %1482 = vmatpush1.bf16.msra.mxu0 %v660
    %1483 = vmatprep.subr.bf16.mxu0 %v665
    %1484 = vmatpush1.bf16.msra.mxu0 %v664
    %1485 = vmatprep.subr.bf16.mxu0 %v669
    %1486 = vmatpush1.bf16.msra.mxu0 %v668
    %1487 = vmatprep.subr.bf16.mxu0 %v673
    %1488 = vmatpush1.bf16.msra.mxu0 %v672
    %1489 = vmatprep.subr.bf16.mxu0 %v677
    %1490 = vmatpush1.bf16.msra.mxu0 %v676
    %1491 = vmatprep.subr.bf16.mxu0 %v681
    %1492 = vmatpush1.bf16.msra.mxu0 %v680
    %1493 = vmatprep.subr.bf16.mxu0 %v685
    %1494 = vmatpush1.bf16.msra.mxu0 %v684
    %1495 = vmatprep.subr.bf16.mxu0 %v689
    %1496 = vmatpush1.bf16.msra.mxu0 %v688
    %1497 = vmatprep.subr.bf16.mxu0 %v693
    %1498 = vmatpush1.bf16.msra.mxu0 %v692
    %1499 = vmatprep.subr.bf16.mxu0 %v697
    %1500 = vmatpush1.bf16.msra.mxu0 %v696
    %1501 = vmatprep.subr.bf16.mxu0 %v701
    %1502 = vmatpush1.bf16.msra.mxu0 %v700
    %1503 = vmatprep.subr.bf16.mxu0 %v705
    %1504 = vmatpush1.bf16.msra.mxu0 %v704
    %1505 = vmatprep.mubr.bf16.mxu0 %v893
    %1506 = vmatmul.mubr.bf16.gmra.mrb[0].mxu0 %v892
    %v1507 = vpop.f32.mrb[0].mxu0
    %v1508 = vadd.f32 %v1465, %v1507
    %v1509 = vpop.f32.mrb[0].mxu0
    %v1510 = vadd.f32 %v1467, %v1509
    %v1511 = vpop.f32.mrb[0].mxu0
    %v1512 = vadd.f32 %v1469, %v1511
    %v1513 = vpop.f32.mrb[0].mxu0
    %v1514 = vadd.f32 %v1471, %v1513
    %1515 = vdwg.mxu0
    %1516 = vmatprep.subr.bf16.mxu0 %v709
    %1517 = vmatpush1.bf16.msra.mxu0 %v708
    %1518 = vmatprep.subr.bf16.mxu0 %v713
    %1519 = vmatpush1.bf16.msra.mxu0 %v712
    %1520 = vmatprep.subr.bf16.mxu0 %v717
    %1521 = vmatpush1.bf16.msra.mxu0 %v716
    %1522 = vmatprep.subr.bf16.mxu0 %v721
    %1523 = vmatpush1.bf16.msra.mxu0 %v720
    %1524 = vmatprep.subr.bf16.mxu0 %v725
    %1525 = vmatpush1.bf16.msra.mxu0 %v724
    %1526 = vmatprep.subr.bf16.mxu0 %v729
    %1527 = vmatpush1.bf16.msra.mxu0 %v728
    %1528 = vmatprep.subr.bf16.mxu0 %v733
    %1529 = vmatpush1.bf16.msra.mxu0 %v732
    %1530 = vmatprep.subr.bf16.mxu0 %v737
    %1531 = vmatpush1.bf16.msra.mxu0 %v736
    %1532 = vmatprep.subr.bf16.mxu0 %v741
    %1533 = vmatpush1.bf16.msra.mxu0 %v740
    %1534 = vmatprep.subr.bf16.mxu0 %v745
    %1535 = vmatpush1.bf16.msra.mxu0 %v744
    %1536 = vmatprep.subr.bf16.mxu0 %v749
    %1537 = vmatpush1.bf16.msra.mxu0 %v748
    %1538 = vmatprep.subr.bf16.mxu0 %v753
    %1539 = vmatpush1.bf16.msra.mxu0 %v752
    %1540 = vmatprep.subr.bf16.mxu0 %v757
    %1541 = vmatpush1.bf16.msra.mxu0 %v756
    %1542 = vmatprep.subr.bf16.mxu0 %v761
    %1543 = vmatpush1.bf16.msra.mxu0 %v760
    %1544 = vmatprep.subr.bf16.mxu0 %v765
    %1545 = vmatpush1.bf16.msra.mxu0 %v764
    %1546 = vmatprep.subr.bf16.mxu0 %v769
    %1547 = vmatpush1.bf16.msra.mxu0 %v768
    %1548 = vmatprep.mubr.bf16.mxu0 %v895
    %1549 = vmatmul.mubr.bf16.gmra.mrb[0].mxu0 %v894
    %v1550 = vpop.f32.mrb[0].mxu0
    %v1551 = vadd.f32 %v1508, %v1550
    %v1552 = vpop.f32.mrb[0].mxu0
    %v1553 = vadd.f32 %v1510, %v1552
    %v1554 = vpop.f32.mrb[0].mxu0
    %v1555 = vadd.f32 %v1512, %v1554
    %v1556 = vpop.f32.mrb[0].mxu0
    %v1557 = vadd.f32 %v1514, %v1556
    %1558 = vdwg.mxu0
    %1559 = vmatprep.subr.bf16.mxu0 %v773
    %1560 = vmatpush1.bf16.msra.mxu0 %v772
    %1561 = vmatprep.subr.bf16.mxu0 %v777
    %1562 = vmatpush1.bf16.msra.mxu0 %v776
    %1563 = vmatprep.subr.bf16.mxu0 %v781
    %1564 = vmatpush1.bf16.msra.mxu0 %v780
    %1565 = vmatprep.subr.bf16.mxu0 %v785
    %1566 = vmatpush1.bf16.msra.mxu0 %v784
    %1567 = vmatprep.subr.bf16.mxu0 %v789
    %1568 = vmatpush1.bf16.msra.mxu0 %v788
    %1569 = vmatprep.subr.bf16.mxu0 %v793
    %1570 = vmatpush1.bf16.msra.mxu0 %v792
    %1571 = vmatprep.subr.bf16.mxu0 %v797
    %1572 = vmatpush1.bf16.msra.mxu0 %v796
    %1573 = vmatprep.subr.bf16.mxu0 %v801
    %1574 = vmatpush1.bf16.msra.mxu0 %v800
    %1575 = vmatprep.subr.bf16.mxu0 %v805
    %1576 = vmatpush1.bf16.msra.mxu0 %v804
    %1577 = vmatprep.subr.bf16.mxu0 %v809
    %1578 = vmatpush1.bf16.msra.mxu0 %v808
    %1579 = vmatprep.subr.bf16.mxu0 %v813
    %1580 = vmatpush1.bf16.msra.mxu0 %v812
    %1581 = vmatprep.subr.bf16.mxu0 %v817
    %1582 = vmatpush1.bf16.msra.mxu0 %v816
    %1583 = vmatprep.subr.bf16.mxu0 %v821
    %1584 = vmatpush1.bf16.msra.mxu0 %v820
    %1585 = vmatprep.subr.bf16.mxu0 %v825
    %1586 = vmatpush1.bf16.msra.mxu0 %v824
    %1587 = vmatprep.subr.bf16.mxu0 %v829
    %1588 = vmatpush1.bf16.msra.mxu0 %v828
    %1589 = vmatprep.subr.bf16.mxu0 %v833
    %1590 = vmatpush1.bf16.msra.mxu0 %v832
    %1591 = vmatprep.mubr.bf16.mxu0 %v897
    %1592 = vmatmul.mubr.bf16.gmra.mrb[0].mxu0 %v896
    %v1593 = vpop.f32.mrb[0].mxu0
    %v1594 = vadd.f32 %v1551, %v1593
    %v1595 = vpop.f32.mrb[0].mxu0
    %v1596 = vadd.f32 %v1553, %v1595
    %v1597 = vpop.f32.mrb[0].mxu0
    %v1598 = vadd.f32 %v1555, %v1597
    %v1599 = vpop.f32.mrb[0].mxu0
    %v1600 = vadd.f32 %v1557, %v1599
    %1601 = vdwg.mxu0
    %v1602 = vld [vmem:[%s2] sm:$0xf]
    %v1604 = vlaneseq
    %v1605 = vshrl.u32 %v1604, 7
    %v1606 = vsub.s32 0, %v1605
    %v1607 = vrot.slane %v1602, %v1606
    %v1608 = vlaneseq
    %v1609 = vshrl.u32 %v1608, 7
    %v1610 = vsub.s32 1, %v1609
    %v1611 = vrot.slane %v1602, %v1610
    %v1612 = vlaneseq
    %v1613 = vshrl.u32 %v1612, 7
    %v1614 = vsub.s32 2, %v1613
    %v1615 = vrot.slane %v1602, %v1614
    %v1616 = vlaneseq
    %v1617 = vshrl.u32 %v1616, 7
    %v1618 = vsub.s32 3, %v1617
    %v1619 = vrot.slane %v1602, %v1618
    %v1624 = vmul.f32 %v1250, %v1607
    %v1625 = vmul.f32 %v1252, %v1611
    %v1626 = vmul.f32 %v1594, %v1615
    %v1627 = vmul.f32 %v1596, %v1619
    %v1628 = vmul.f32 %v1254, %v1607
    %v1629 = vmul.f32 %v1256, %v1611
    %v1630 = vmul.f32 %v1598, %v1615
    %v1631 = vmul.f32 %v1600, %v1619
    %v1632 = vld [vmem:[%s3] sm:$0xf]
    %v1634 = vlaneseq
    %v1635 = vshrl.u32 %v1634, 7
    %v1636 = vsub.s32 0, %v1635
    %v1637 = vrot.slane %v1632, %v1636
    %v1638 = vlaneseq
    %v1639 = vshrl.u32 %v1638, 7
    %v1640 = vsub.s32 1, %v1639
    %v1641 = vrot.slane %v1632, %v1640
    %v1642 = vlaneseq
    %v1643 = vshrl.u32 %v1642, 7
    %v1644 = vsub.s32 2, %v1643
    %v1645 = vrot.slane %v1632, %v1644
    %v1646 = vlaneseq
    %v1647 = vshrl.u32 %v1646, 7
    %v1648 = vsub.s32 3, %v1647
    %v1649 = vrot.slane %v1632, %v1648
    %v1654 = vadd.f32 %v1624, %v1637
    %v1655 = vadd.f32 %v1625, %v1641
    %v1656 = vadd.f32 %v1626, %v1645
    %v1657 = vadd.f32 %v1627, %v1649
    %v1658 = vadd.f32 %v1628, %v1637
    %v1659 = vadd.f32 %v1629, %v1641
    %v1660 = vadd.f32 %v1630, %v1645
    %v1661 = vadd.f32 %v1631, %v1649
    %v1662 = vmax.f32 %v1654, 0.0
    %v1663 = vmax.f32 %v1655, 0.0
    %v1664 = vmax.f32 %v1656, 0.0
    %v1665 = vmax.f32 %v1657, 0.0
    %v1666 = vmax.f32 %v1658, 0.0
    %v1667 = vmax.f32 %v1659, 0.0
    %v1668 = vmax.f32 %v1660, 0.0
    %v1669 = vmax.f32 %v1661, 0.0
    %v1670 = vpack.c.bf16 %v1666, %v1662
    %v1671 = vpack.c.bf16 %v1667, %v1663
    %v1672 = vpack.c.bf16 %v1668, %v1664
    %v1673 = vpack.c.bf16 %v1669, %v1665
    %v1674 = vld [vmem:[#allocation2] sm:$0xff]
    %v1675 = vld [vmem:[#allocation2 + $0x8] sm:$0xff]
    %v1676 = vld [vmem:[#allocation2 + $0x10] sm:$0xff]
    %v1677 = vld [vmem:[#allocation2 + $0x18] sm:$0xff]
    %v1678 = vld [vmem:[#allocation2 + $0x20] sm:$0xff]
    %v1679 = vld [vmem:[#allocation2 + $0x28] sm:$0xff]
    %v1680 = vld [vmem:[#allocation2 + $0x30] sm:$0xff]
    %v1681 = vld [vmem:[#allocation2 + $0x38] sm:$0xff]
    %v1682 = vld [vmem:[#allocation2 + $0x40] sm:$0xff]
    %v1683 = vld [vmem:[#allocation2 + $0x48] sm:$0xff]
    %v1684 = vld [vmem:[#allocation2 + $0x50] sm:$0xff]
    %v1685 = vld [vmem:[#allocation2 + $0x58] sm:$0xff]
    %v1686 = vld [vmem:[#allocation2 + $0x60] sm:$0xff]
    %v1687 = vld [vmem:[#allocation2 + $0x68] sm:$0xff]
    %v1688 = vld [vmem:[#allocation2 + $0x70] sm:$0xff]
    %v1689 = vld [vmem:[#allocation2 + $0x78] sm:$0xff]
    %v1690 = vld [vmem:[#allocation2 + $0x80] sm:$0xff]
    %v1691 = vld [vmem:[#allocation2 + $0x88] sm:$0xff]
    %v1692 = vld [vmem:[#allocation2 + $0x90] sm:$0xff]
    %v1693 = vld [vmem:[#allocation2 + $0x98] sm:$0xff]
    %v1694 = vld [vmem:[#allocation2 + $0xa0] sm:$0xff]
    %v1695 = vld [vmem:[#allocation2 + $0xa8] sm:$0xff]
    %v1696 = vld [vmem:[#allocation2 + $0xb0] sm:$0xff]
    %v1697 = vld [vmem:[#allocation2 + $0xb8] sm:$0xff]
    %v1698 = vld [vmem:[#allocation2 + $0xc0] sm:$0xff]
    %v1699 = vld [vmem:[#allocation2 + $0xc8] sm:$0xff]
    %v1700 = vld [vmem:[#allocation2 + $0xd0] sm:$0xff]
    %v1701 = vld [vmem:[#allocation2 + $0xd8] sm:$0xff]
    %v1702 = vld [vmem:[#allocation2 + $0xe0] sm:$0xff]
    %v1703 = vld [vmem:[#allocation2 + $0xe8] sm:$0xff]
    %v1704 = vld [vmem:[#allocation2 + $0xf0] sm:$0xff]
    %v1705 = vld [vmem:[#allocation2 + $0xf8] sm:$0xff]
    %v1706 = vld [vmem:[#allocation2 + $0x100] sm:$0xff]
    %v1707 = vld [vmem:[#allocation2 + $0x108] sm:$0xff]
    %v1708 = vld [vmem:[#allocation2 + $0x110] sm:$0xff]
    %v1709 = vld [vmem:[#allocation2 + $0x118] sm:$0xff]
    %v1710 = vld [vmem:[#allocation2 + $0x120] sm:$0xff]
    %v1711 = vld [vmem:[#allocation2 + $0x128] sm:$0xff]
    %v1712 = vld [vmem:[#allocation2 + $0x130] sm:$0xff]
    %v1713 = vld [vmem:[#allocation2 + $0x138] sm:$0xff]
    %v1714 = vld [vmem:[#allocation2 + $0x140] sm:$0xff]
    %v1715 = vld [vmem:[#allocation2 + $0x148] sm:$0xff]
    %v1716 = vld [vmem:[#allocation2 + $0x150] sm:$0xff]
    %v1717 = vld [vmem:[#allocation2 + $0x158] sm:$0xff]
    %v1718 = vld [vmem:[#allocation2 + $0x160] sm:$0xff]
    %v1719 = vld [vmem:[#allocation2 + $0x168] sm:$0xff]
    %v1720 = vld [vmem:[#allocation2 + $0x170] sm:$0xff]
    %v1721 = vld [vmem:[#allocation2 + $0x178] sm:$0xff]
    %v1722 = vld [vmem:[#allocation2 + $0x180] sm:$0xff]
    %v1723 = vld [vmem:[#allocation2 + $0x188] sm:$0xff]
    %v1724 = vld [vmem:[#allocation2 + $0x190] sm:$0xff]
    %v1725 = vld [vmem:[#allocation2 + $0x198] sm:$0xff]
    %v1726 = vld [vmem:[#allocation2 + $0x1a0] sm:$0xff]
    %v1727 = vld [vmem:[#allocation2 + $0x1a8] sm:$0xff]
    %v1728 = vld [vmem:[#allocation2 + $0x1b0] sm:$0xff]
    %v1729 = vld [vmem:[#allocation2 + $0x1b8] sm:$0xff]
    %v1730 = vld [vmem:[#allocation2 + $0x1c0] sm:$0xff]
    %v1731 = vld [vmem:[#allocation2 + $0x1c8] sm:$0xff]
    %v1732 = vld [vmem:[#allocation2 + $0x1d0] sm:$0xff]
    %v1733 = vld [vmem:[#allocation2 + $0x1d8] sm:$0xff]
    %v1734 = vld [vmem:[#allocation2 + $0x1e0] sm:$0xff]
    %v1735 = vld [vmem:[#allocation2 + $0x1e8] sm:$0xff]
    %v1736 = vld [vmem:[#allocation2 + $0x1f0] sm:$0xff]
    %v1737 = vld [vmem:[#allocation2 + $0x1f8] sm:$0xff]
    %v1738 = vunpack.c.l.s8.bf16 %v1674
    %v1739 = vunpack.c.l.s8.bf16 %v1675
    %v1740 = vunpack.c.l.s8.bf16 %v1676
    %v1741 = vunpack.c.l.s8.bf16 %v1677
    %v1742 = vunpack.c.h.s8.bf16 %v1674
    %v1743 = vunpack.c.h.s8.bf16 %v1675
    %v1744 = vunpack.c.h.s8.bf16 %v1676
    %v1745 = vunpack.c.h.s8.bf16 %v1677
    %v1746 = vunpack.c.l.s8.bf16 %v1678
    %v1747 = vunpack.c.l.s8.bf16 %v1679
    %v1748 = vunpack.c.l.s8.bf16 %v1680
    %v1749 = vunpack.c.l.s8.bf16 %v1681
    %v1750 = vunpack.c.h.s8.bf16 %v1678
    %v1751 = vunpack.c.h.s8.bf16 %v1679
    %v1752 = vunpack.c.h.s8.bf16 %v1680
    %v1753 = vunpack.c.h.s8.bf16 %v1681
    %v1754 = vunpack.c.l.s8.bf16 %v1682
    %v1755 = vunpack.c.l.s8.bf16 %v1683
    %v1756 = vunpack.c.l.s8.bf16 %v1684
    %v1757 = vunpack.c.l.s8.bf16 %v1685
    %v1758 = vunpack.c.h.s8.bf16 %v1682
    %v1759 = vunpack.c.h.s8.bf16 %v1683
    %v1760 = vunpack.c.h.s8.bf16 %v1684
    %v1761 = vunpack.c.h.s8.bf16 %v1685
    %v1762 = vunpack.c.l.s8.bf16 %v1686
    %v1763 = vunpack.c.l.s8.bf16 %v1687
    %v1764 = vunpack.c.l.s8.bf16 %v1688
    %v1765 = vunpack.c.l.s8.bf16 %v1689
    %v1766 = vunpack.c.h.s8.bf16 %v1686
    %v1767 = vunpack.c.h.s8.bf16 %v1687
    %v1768 = vunpack.c.h.s8.bf16 %v1688
    %v1769 = vunpack.c.h.s8.bf16 %v1689
    %v1770 = vunpack.c.l.s8.bf16 %v1690
    %v1771 = vunpack.c.l.s8.bf16 %v1691
    %v1772 = vunpack.c.l.s8.bf16 %v1692
    %v1773 = vunpack.c.l.s8.bf16 %v1693
    %v1774 = vunpack.c.h.s8.bf16 %v1690
    %v1775 = vunpack.c.h.s8.bf16 %v1691
    %v1776 = vunpack.c.h.s8.bf16 %v1692
    %v1777 = vunpack.c.h.s8.bf16 %v1693
    %v1778 = vunpack.c.l.s8.bf16 %v1694
    %v1779 = vunpack.c.l.s8.bf16 %v1695
    %v1780 = vunpack.c.l.s8.bf16 %v1696
    %v1781 = vunpack.c.l.s8.bf16 %v1697
    %v1782 = vunpack.c.h.s8.bf16 %v1694
    %v1783 = vunpack.c.h.s8.bf16 %v1695
    %v1784 = vunpack.c.h.s8.bf16 %v1696
    %v1785 = vunpack.c.h.s8.bf16 %v1697
    %v1786 = vunpack.c.l.s8.bf16 %v1698
    %v1787 = vunpack.c.l.s8.bf16 %v1699
    %v1788 = vunpack.c.l.s8.bf16 %v1700
    %v1789 = vunpack.c.l.s8.bf16 %v1701
    %v1790 = vunpack.c.h.s8.bf16 %v1698
    %v1791 = vunpack.c.h.s8.bf16 %v1699
    %v1792 = vunpack.c.h.s8.bf16 %v1700
    %v1793 = vunpack.c.h.s8.bf16 %v1701
    %v1794 = vunpack.c.l.s8.bf16 %v1702
    %v1795 = vunpack.c.l.s8.bf16 %v1703
    %v1796 = vunpack.c.l.s8.bf16 %v1704
    %v1797 = vunpack.c.l.s8.bf16 %v1705
    %v1798 = vunpack.c.h.s8.bf16 %v1702
    %v1799 = vunpack.c.h.s8.bf16 %v1703
    %v1800 = vunpack.c.h.s8.bf16 %v1704
    %v1801 = vunpack.c.h.s8.bf16 %v1705
    %v1802 = vunpack.c.l.s8.bf16 %v1706
    %v1803 = vunpack.c.l.s8.bf16 %v1707
    %v1804 = vunpack.c.l.s8.bf16 %v1708
    %v1805 = vunpack.c.l.s8.bf16 %v1709
    %v1806 = vunpack.c.h.s8.bf16 %v1706
    %v1807 = vunpack.c.h.s8.bf16 %v1707
    %v1808 = vunpack.c.h.s8.bf16 %v1708
    %v1809 = vunpack.c.h.s8.bf16 %v1709
    %v1810 = vunpack.c.l.s8.bf16 %v1710
    %v1811 = vunpack.c.l.s8.bf16 %v1711
    %v1812 = vunpack.c.l.s8.bf16 %v1712
    %v1813 = vunpack.c.l.s8.bf16 %v1713
    %v1814 = vunpack.c.h.s8.bf16 %v1710
    %v1815 = vunpack.c.h.s8.bf16 %v1711
    %v1816 = vunpack.c.h.s8.bf16 %v1712
    %v1817 = vunpack.c.h.s8.bf16 %v1713
    %v1818 = vunpack.c.l.s8.bf16 %v1714
    %v1819 = vunpack.c.l.s8.bf16 %v1715
    %v1820 = vunpack.c.l.s8.bf16 %v1716
    %v1821 = vunpack.c.l.s8.bf16 %v1717
    %v1822 = vunpack.c.h.s8.bf16 %v1714
    %v1823 = vunpack.c.h.s8.bf16 %v1715
    %v1824 = vunpack.c.h.s8.bf16 %v1716
    %v1825 = vunpack.c.h.s8.bf16 %v1717
    %v1826 = vunpack.c.l.s8.bf16 %v1718
    %v1827 = vunpack.c.l.s8.bf16 %v1719
    %v1828 = vunpack.c.l.s8.bf16 %v1720
    %v1829 = vunpack.c.l.s8.bf16 %v1721
    %v1830 = vunpack.c.h.s8.bf16 %v1718
    %v1831 = vunpack.c.h.s8.bf16 %v1719
    %v1832 = vunpack.c.h.s8.bf16 %v1720
    %v1833 = vunpack.c.h.s8.bf16 %v1721
    %v1834 = vunpack.c.l.s8.bf16 %v1722
    %v1835 = vunpack.c.l.s8.bf16 %v1723
    %v1836 = vunpack.c.l.s8.bf16 %v1724
    %v1837 = vunpack.c.l.s8.bf16 %v1725
    %v1838 = vunpack.c.h.s8.bf16 %v1722
    %v1839 = vunpack.c.h.s8.bf16 %v1723
    %v1840 = vunpack.c.h.s8.bf16 %v1724
    %v1841 = vunpack.c.h.s8.bf16 %v1725
    %v1842 = vunpack.c.l.s8.bf16 %v1726
    %v1843 = vunpack.c.l.s8.bf16 %v1727
    %v1844 = vunpack.c.l.s8.bf16 %v1728
    %v1845 = vunpack.c.l.s8.bf16 %v1729
    %v1846 = vunpack.c.h.s8.bf16 %v1726
    %v1847 = vunpack.c.h.s8.bf16 %v1727
    %v1848 = vunpack.c.h.s8.bf16 %v1728
    %v1849 = vunpack.c.h.s8.bf16 %v1729
    %v1850 = vunpack.c.l.s8.bf16 %v1730
    %v1851 = vunpack.c.l.s8.bf16 %v1731
    %v1852 = vunpack.c.l.s8.bf16 %v1732
    %v1853 = vunpack.c.l.s8.bf16 %v1733
    %v1854 = vunpack.c.h.s8.bf16 %v1730
    %v1855 = vunpack.c.h.s8.bf16 %v1731
    %v1856 = vunpack.c.h.s8.bf16 %v1732
    %v1857 = vunpack.c.h.s8.bf16 %v1733
    %v1858 = vunpack.c.l.s8.bf16 %v1734
    %v1859 = vunpack.c.l.s8.bf16 %v1735
    %v1860 = vunpack.c.l.s8.bf16 %v1736
    %v1861 = vunpack.c.l.s8.bf16 %v1737
    %v1862 = vunpack.c.h.s8.bf16 %v1734
    %v1863 = vunpack.c.h.s8.bf16 %v1735
    %v1864 = vunpack.c.h.s8.bf16 %v1736
    %v1865 = vunpack.c.h.s8.bf16 %v1737
    %1866 = vmatprep.subr.bf16.mxu0 %v1739
    %1867 = vmatpush1.bf16.msra.mxu0 %v1738
    %1868 = vmatprep.subr.bf16.mxu0 %v1743
    %1869 = vmatpush1.bf16.msra.mxu0 %v1742
    %1870 = vmatprep.subr.bf16.mxu0 %v1747
    %1871 = vmatpush1.bf16.msra.mxu0 %v1746
    %1872 = vmatprep.subr.bf16.mxu0 %v1751
    %1873 = vmatpush1.bf16.msra.mxu0 %v1750
    %1874 = vmatprep.subr.bf16.mxu0 %v1755
    %1875 = vmatpush1.bf16.msra.mxu0 %v1754
    %1876 = vmatprep.subr.bf16.mxu0 %v1759
    %1877 = vmatpush1.bf16.msra.mxu0 %v1758
    %1878 = vmatprep.subr.bf16.mxu0 %v1763
    %1879 = vmatpush1.bf16.msra.mxu0 %v1762
    %1880 = vmatprep.subr.bf16.mxu0 %v1767
    %1881 = vmatpush1.bf16.msra.mxu0 %v1766
    %1882 = vmatprep.subr.bf16.mxu0 %v1771
    %1883 = vmatpush1.bf16.msra.mxu0 %v1770
    %1884 = vmatprep.subr.bf16.mxu0 %v1775
    %1885 = vmatpush1.bf16.msra.mxu0 %v1774
    %1886 = vmatprep.subr.bf16.mxu0 %v1779
    %1887 = vmatpush1.bf16.msra.mxu0 %v1778
    %1888 = vmatprep.subr.bf16.mxu0 %v1783
    %1889 = vmatpush1.bf16.msra.mxu0 %v1782
    %1890 = vmatprep.subr.bf16.mxu0 %v1787
    %1891 = vmatpush1.bf16.msra.mxu0 %v1786
    %1892 = vmatprep.subr.bf16.mxu0 %v1791
    %1893 = vmatpush1.bf16.msra.mxu0 %v1790
    %1894 = vmatprep.subr.bf16.mxu0 %v1795
    %1895 = vmatpush1.bf16.msra.mxu0 %v1794
    %1896 = vmatprep.subr.bf16.mxu0 %v1799
    %1897 = vmatpush1.bf16.msra.mxu0 %v1798
    %1898 = vmatprep.mubr.bf16.mxu0 %v1671
    %1899 = vmatmul.mubr.bf16.gmra.mrb[0].mxu0 %v1670
    %v1900 = vpop.f32.mrb[0].mxu0
    %v1901 = vadd.f32 0.0, %v1900
    %v1902 = vpop.f32.mrb[0].mxu0
    %v1903 = vadd.f32 0.0, %v1902
    %v1904 = vpop.f32.mrb[0].mxu0
    %v1905 = vadd.f32 0.0, %v1904
    %v1906 = vpop.f32.mrb[0].mxu0
    %v1907 = vadd.f32 0.0, %v1906
    %1908 = vdwg.mxu0
    %1909 = vmatprep.subr.bf16.mxu0 %v1803
    %1910 = vmatpush1.bf16.msra.mxu0 %v1802
    %1911 = vmatprep.subr.bf16.mxu0 %v1807
    %1912 = vmatpush1.bf16.msra.mxu0 %v1806
    %1913 = vmatprep.subr.bf16.mxu0 %v1811
    %1914 = vmatpush1.bf16.msra.mxu0 %v1810
    %1915 = vmatprep.subr.bf16.mxu0 %v1815
    %1916 = vmatpush1.bf16.msra.mxu0 %v1814
    %1917 = vmatprep.subr.bf16.mxu0 %v1819
    %1918 = vmatpush1.bf16.msra.mxu0 %v1818
    %1919 = vmatprep.subr.bf16.mxu0 %v1823
    %1920 = vmatpush1.bf16.msra.mxu0 %v1822
    %1921 = vmatprep.subr.bf16.mxu0 %v1827
    %1922 = vmatpush1.bf16.msra.mxu0 %v1826
    %1923 = vmatprep.subr.bf16.mxu0 %v1831
    %1924 = vmatpush1.bf16.msra.mxu0 %v1830
    %1925 = vmatprep.subr.bf16.mxu0 %v1835
    %1926 = vmatpush1.bf16.msra.mxu0 %v1834
    %1927 = vmatprep.subr.bf16.mxu0 %v1839
    %1928 = vmatpush1.bf16.msra.mxu0 %v1838
    %1929 = vmatprep.subr.bf16.mxu0 %v1843
    %1930 = vmatpush1.bf16.msra.mxu0 %v1842
    %1931 = vmatprep.subr.bf16.mxu0 %v1847
    %1932 = vmatpush1.bf16.msra.mxu0 %v1846
    %1933 = vmatprep.subr.bf16.mxu0 %v1851
    %1934 = vmatpush1.bf16.msra.mxu0 %v1850
    %1935 = vmatprep.subr.bf16.mxu0 %v1855
    %1936 = vmatpush1.bf16.msra.mxu0 %v1854
    %1937 = vmatprep.subr.bf16.mxu0 %v1859
    %1938 = vmatpush1.bf16.msra.mxu0 %v1858
    %1939 = vmatprep.subr.bf16.mxu0 %v1863
    %1940 = vmatpush1.bf16.msra.mxu0 %v1862
    %1941 = vmatprep.mubr.bf16.mxu0 %v1673
    %1942 = vmatmul.mubr.bf16.gmra.mrb[0].mxu0 %v1672
    %v1943 = vpop.f32.mrb[0].mxu0
    %v1944 = vadd.f32 %v1901, %v1943
    %v1945 = vpop.f32.mrb[0].mxu0
    %v1946 = vadd.f32 %v1903, %v1945
    %v1947 = vpop.f32.mrb[0].mxu0
    %v1948 = vadd.f32 %v1905, %v1947
    %v1949 = vpop.f32.mrb[0].mxu0
    %v1950 = vadd.f32 %v1907, %v1949
    %1951 = vdwg.mxu0
    %1952 = vmatprep.subr.bf16.mxu0 %v1741
    %1953 = vmatpush1.bf16.msra.mxu0 %v1740
    %1954 = vmatprep.subr.bf16.mxu0 %v1745
    %1955 = vmatpush1.bf16.msra.mxu0 %v1744
    %1956 = vmatprep.subr.bf16.mxu0 %v1749
    %1957 = vmatpush1.bf16.msra.mxu0 %v1748
    %1958 = vmatprep.subr.bf16.mxu0 %v1753
    %1959 = vmatpush1.bf16.msra.mxu0 %v1752
    %1960 = vmatprep.subr.bf16.mxu0 %v1757
    %1961 = vmatpush1.bf16.msra.mxu0 %v1756
    %1962 = vmatprep.subr.bf16.mxu0 %v1761
    %1963 = vmatpush1.bf16.msra.mxu0 %v1760
    %1964 = vmatprep.subr.bf16.mxu0 %v1765
    %1965 = vmatpush1.bf16.msra.mxu0 %v1764
    %1966 = vmatprep.subr.bf16.mxu0 %v1769
    %1967 = vmatpush1.bf16.msra.mxu0 %v1768
    %1968 = vmatprep.subr.bf16.mxu0 %v1773
    %1969 = vmatpush1.bf16.msra.mxu0 %v1772
    %1970 = vmatprep.subr.bf16.mxu0 %v1777
    %1971 = vmatpush1.bf16.msra.mxu0 %v1776
    %1972 = vmatprep.subr.bf16.mxu0 %v1781
    %1973 = vmatpush1.bf16.msra.mxu0 %v1780
    %1974 = vmatprep.subr.bf16.mxu0 %v1785
    %1975 = vmatpush1.bf16.msra.mxu0 %v1784
    %1976 = vmatprep.subr.bf16.mxu0 %v1789
    %1977 = vmatpush1.bf16.msra.mxu0 %v1788
    %1978 = vmatprep.subr.bf16.mxu0 %v1793
    %1979 = vmatpush1.bf16.msra.mxu0 %v1792
    %1980 = vmatprep.subr.bf16.mxu0 %v1797
    %1981 = vmatpush1.bf16.msra.mxu0 %v1796
    %1982 = vmatprep.subr.bf16.mxu0 %v1801
    %1983 = vmatpush1.bf16.msra.mxu0 %v1800
    %1984 = vmatprep.mubr.bf16.mxu0 %v1671
    %1985 = vmatmul.mubr.bf16.gmra.mrb[0].mxu0 %v1670
    %v1986 = vpop.f32.mrb[0].mxu0
    %v1987 = vadd.f32 0.0, %v1986
    %v1988 = vpop.f32.mrb[0].mxu0
    %v1989 = vadd.f32 0.0, %v1988
    %v1990 = vpop.f32.mrb[0].mxu0
    %v1991 = vadd.f32 0.0, %v1990
    %v1992 = vpop.f32.mrb[0].mxu0
    %v1993 = vadd.f32 0.0, %v1992
    %1994 = vdwg.mxu0
    %1995 = vmatprep.subr.bf16.mxu0 %v1805
    %1996 = vmatpush1.bf16.msra.mxu0 %v1804
    %1997 = vmatprep.subr.bf16.mxu0 %v1809
    %1998 = vmatpush1.bf16.msra.mxu0 %v1808
    %1999 = vmatprep.subr.bf16.mxu0 %v1813
    %2000 = vmatpush1.bf16.msra.mxu0 %v1812
    %2001 = vmatprep.subr.bf16.mxu0 %v1817
    %2002 = vmatpush1.bf16.msra.mxu0 %v1816
    %2003 = vmatprep.subr.bf16.mxu0 %v1821
    %2004 = vmatpush1.bf16.msra.mxu0 %v1820
    %2005 = vmatprep.subr.bf16.mxu0 %v1825
    %2006 = vmatpush1.bf16.msra.mxu0 %v1824
    %2007 = vmatprep.subr.bf16.mxu0 %v1829
    %2008 = vmatpush1.bf16.msra.mxu0 %v1828
    %2009 = vmatprep.subr.bf16.mxu0 %v1833
    %2010 = vmatpush1.bf16.msra.mxu0 %v1832
    %2011 = vmatprep.subr.bf16.mxu0 %v1837
    %2012 = vmatpush1.bf16.msra.mxu0 %v1836
    %2013 = vmatprep.subr.bf16.mxu0 %v1841
    %2014 = vmatpush1.bf16.msra.mxu0 %v1840
    %2015 = vmatprep.subr.bf16.mxu0 %v1845
    %2016 = vmatpush1.bf16.msra.mxu0 %v1844
    %2017 = vmatprep.subr.bf16.mxu0 %v1849
    %2018 = vmatpush1.bf16.msra.mxu0 %v1848
    %2019 = vmatprep.subr.bf16.mxu0 %v1853
    %2020 = vmatpush1.bf16.msra.mxu0 %v1852
    %2021 = vmatprep.subr.bf16.mxu0 %v1857
    %2022 = vmatpush1.bf16.msra.mxu0 %v1856
    %2023 = vmatprep.subr.bf16.mxu0 %v1861
    %2024 = vmatpush1.bf16.msra.mxu0 %v1860
    %2025 = vmatprep.subr.bf16.mxu0 %v1865
    %2026 = vmatpush1.bf16.msra.mxu0 %v1864
    %2027 = vmatprep.mubr.bf16.mxu0 %v1673
    %2028 = vmatmul.mubr.bf16.gmra.mrb[0].mxu0 %v1672
    %v2029 = vpop.f32.mrb[0].mxu0
    %v2030 = vadd.f32 %v1987, %v2029
    %v2031 = vpop.f32.mrb[0].mxu0
    %v2032 = vadd.f32 %v1989, %v2031
    %v2033 = vpop.f32.mrb[0].mxu0
    %v2034 = vadd.f32 %v1991, %v2033
    %v2035 = vpop.f32.mrb[0].mxu0
    %v2036 = vadd.f32 %v1993, %v2035
    %2037 = vdwg.mxu0
    %v2038 = vld [vmem:[%s5] sm:$0xf]
    %v2040 = vlaneseq
    %v2041 = vshrl.u32 %v2040, 7
    %v2042 = vsub.s32 0, %v2041
    %v2043 = vrot.slane %v2038, %v2042
    %v2044 = vlaneseq
    %v2045 = vshrl.u32 %v2044, 7
    %v2046 = vsub.s32 1, %v2045
    %v2047 = vrot.slane %v2038, %v2046
    %v2048 = vlaneseq
    %v2049 = vshrl.u32 %v2048, 7
    %v2050 = vsub.s32 2, %v2049
    %v2051 = vrot.slane %v2038, %v2050
    %v2052 = vlaneseq
    %v2053 = vshrl.u32 %v2052, 7
    %v2054 = vsub.s32 3, %v2053
    %v2055 = vrot.slane %v2038, %v2054
    %v2060 = vmul.f32 %v1944, %v2043
    %v2061 = vmul.f32 %v1946, %v2047
    %v2062 = vmul.f32 %v2030, %v2051
    %v2063 = vmul.f32 %v2032, %v2055
    %v2064 = vmul.f32 %v1948, %v2043
    %v2065 = vmul.f32 %v1950, %v2047
    %v2066 = vmul.f32 %v2034, %v2051
    %v2067 = vmul.f32 %v2036, %v2055
    %v2068 = vld [vmem:[%s6] sm:$0xf]
    %v2070 = vlaneseq
    %v2071 = vshrl.u32 %v2070, 7
    %v2072 = vsub.s32 0, %v2071
    %v2073 = vrot.slane %v2068, %v2072
    %v2074 = vlaneseq
    %v2075 = vshrl.u32 %v2074, 7
    %v2076 = vsub.s32 1, %v2075
    %v2077 = vrot.slane %v2068, %v2076
    %v2078 = vlaneseq
    %v2079 = vshrl.u32 %v2078, 7
    %v2080 = vsub.s32 2, %v2079
    %v2081 = vrot.slane %v2068, %v2080
    %v2082 = vlaneseq
    %v2083 = vshrl.u32 %v2082, 7
    %v2084 = vsub.s32 3, %v2083
    %v2085 = vrot.slane %v2068, %v2084
    %v2090 = vadd.f32 %v2060, %v2073
    %v2091 = vadd.f32 %v2061, %v2077
    %v2092 = vadd.f32 %v2062, %v2081
    %v2093 = vadd.f32 %v2063, %v2085
    %v2094 = vadd.f32 %v2064, %v2073
    %v2095 = vadd.f32 %v2065, %v2077
    %v2096 = vadd.f32 %v2066, %v2081
    %v2097 = vadd.f32 %v2067, %v2085
    %v2098 = vmax.f32 %v2090, 0.0
    %v2099 = vmax.f32 %v2091, 0.0
    %v2100 = vmax.f32 %v2092, 0.0
    %v2101 = vmax.f32 %v2093, 0.0
    %v2102 = vmax.f32 %v2094, 0.0
    %v2103 = vmax.f32 %v2095, 0.0
    %v2104 = vmax.f32 %v2096, 0.0
    %v2105 = vmax.f32 %v2097, 0.0
    %v2106 = vpack.c.bf16 %v2102, %v2098
    %v2107 = vpack.c.bf16 %v2103, %v2099
    %v2108 = vpack.c.bf16 %v2104, %v2100
    %v2109 = vpack.c.bf16 %v2105, %v2101
    %v2110 = vld [vmem:[%s7] sm:$0xff]
    %v2111 = vld [vmem:[%s7 + $0x8] sm:$0xff]
    %v2112 = vld [vmem:[%s7 + $0x10] sm:$0xff]
    %v2113 = vld [vmem:[%s7 + $0x18] sm:$0xff]
    %v2114 = vld [vmem:[%s7 + $0x20] sm:$0xff]
    %v2115 = vld [vmem:[%s7 + $0x28] sm:$0xff]
    %v2116 = vld [vmem:[%s7 + $0x30] sm:$0xff]
    %v2117 = vld [vmem:[%s7 + $0x38] sm:$0xff]
    %v2118 = vld [vmem:[%s7 + $0x40] sm:$0xff]
    %v2119 = vld [vmem:[%s7 + $0x48] sm:$0xff]
    %v2120 = vld [vmem:[%s7 + $0x50] sm:$0xff]
    %v2121 = vld [vmem:[%s7 + $0x58] sm:$0xff]
    %v2122 = vld [vmem:[%s7 + $0x60] sm:$0xff]
    %v2123 = vld [vmem:[%s7 + $0x68] sm:$0xff]
    %v2124 = vld [vmem:[%s7 + $0x70] sm:$0xff]
    %v2125 = vld [vmem:[%s7 + $0x78] sm:$0xff]
    %v2126 = vunpack.c.l.s8.bf16 %v2110
    %v2127 = vunpack.c.h.s8.bf16 %v2110
    %v2128 = vunpack.c.l.s8.bf16 %v2111
    %v2129 = vunpack.c.h.s8.bf16 %v2111
    %v2130 = vunpack.c.l.s8.bf16 %v2112
    %v2131 = vunpack.c.h.s8.bf16 %v2112
    %v2132 = vunpack.c.l.s8.bf16 %v2113
    %v2133 = vunpack.c.h.s8.bf16 %v2113
    %v2134 = vunpack.c.l.s8.bf16 %v2114
    %v2135 = vunpack.c.h.s8.bf16 %v2114
    %v2136 = vunpack.c.l.s8.bf16 %v2115
    %v2137 = vunpack.c.h.s8.bf16 %v2115
    %v2138 = vunpack.c.l.s8.bf16 %v2116
    %v2139 = vunpack.c.h.s8.bf16 %v2116
    %v2140 = vunpack.c.l.s8.bf16 %v2117
    %v2141 = vunpack.c.h.s8.bf16 %v2117
    %v2142 = vunpack.c.l.s8.bf16 %v2118
    %v2143 = vunpack.c.h.s8.bf16 %v2118
    %v2144 = vunpack.c.l.s8.bf16 %v2119
    %v2145 = vunpack.c.h.s8.bf16 %v2119
    %v2146 = vunpack.c.l.s8.bf16 %v2120
    %v2147 = vunpack.c.h.s8.bf16 %v2120
    %v2148 = vunpack.c.l.s8.bf16 %v2121
    %v2149 = vunpack.c.h.s8.bf16 %v2121
    %v2150 = vunpack.c.l.s8.bf16 %v2122
    %v2151 = vunpack.c.h.s8.bf16 %v2122
    %v2152 = vunpack.c.l.s8.bf16 %v2123
    %v2153 = vunpack.c.h.s8.bf16 %v2123
    %v2154 = vunpack.c.l.s8.bf16 %v2124
    %v2155 = vunpack.c.h.s8.bf16 %v2124
    %v2156 = vunpack.c.l.s8.bf16 %v2125
    %v2157 = vunpack.c.h.s8.bf16 %v2125
    %2158 = vmatprep.subr.bf16.mxu0 0
    %2159 = vmatpush1.bf16.msra.mxu0 %v2126
    %2160 = vmatprep.subr.bf16.mxu0 0
    %2161 = vmatpush1.bf16.msra.mxu0 %v2127
    %2162 = vmatprep.subr.bf16.mxu0 0
    %2163 = vmatpush1.bf16.msra.mxu0 %v2128
    %2164 = vmatprep.subr.bf16.mxu0 0
    %2165 = vmatpush1.bf16.msra.mxu0 %v2129
    %2166 = vmatprep.subr.bf16.mxu0 0
    %2167 = vmatpush1.bf16.msra.mxu0 %v2130
    %2168 = vmatprep.subr.bf16.mxu0 0
    %2169 = vmatpush1.bf16.msra.mxu0 %v2131
    %2170 = vmatprep.subr.bf16.mxu0 0
    %2171 = vmatpush1.bf16.msra.mxu0 %v2132
    %2172 = vmatprep.subr.bf16.mxu0 0
    %2173 = vmatpush1.bf16.msra.mxu0 %v2133
    %2174 = vmatprep.subr.bf16.mxu0 0
    %2175 = vmatpush1.bf16.msra.mxu0 %v2134
    %2176 = vmatprep.subr.bf16.mxu0 0
    %2177 = vmatpush1.bf16.msra.mxu0 %v2135
    %2178 = vmatprep.subr.bf16.mxu0 0
    %2179 = vmatpush1.bf16.msra.mxu0 %v2136
    %2180 = vmatprep.subr.bf16.mxu0 0
    %2181 = vmatpush1.bf16.msra.mxu0 %v2137
    %2182 = vmatprep.subr.bf16.mxu0 0
    %2183 = vmatpush1.bf16.msra.mxu0 %v2138
    %2184 = vmatprep.subr.bf16.mxu0 0
    %2185 = vmatpush1.bf16.msra.mxu0 %v2139
    %2186 = vmatprep.subr.bf16.mxu0 0
    %2187 = vmatpush1.bf16.msra.mxu0 %v2140
    %2188 = vmatprep.subr.bf16.mxu0 0
    %2189 = vmatpush1.bf16.msra.mxu0 %v2141
    %2190 = vmatprep.mubr.bf16.mxu0 %v2107
    %2191 = vmatmul.mubr.bf16.gmra.mrb[0].mxu0 %v2106
    %v2192 = vpop.f32.mrb[0].mxu0
    %v2193 = vadd.f32 0.0, %v2192
    %v2194 = vpop.f32.mrb[0].mxu0
    %v2195 = vpop.f32.mrb[0].mxu0
    %v2196 = vadd.f32 0.0, %v2195
    %v2197 = vpop.f32.mrb[0].mxu0
    %2198 = vdwg.mxu0
    %2199 = vmatprep.subr.bf16.mxu0 0
    %2200 = vmatpush1.bf16.msra.mxu0 %v2142
    %2201 = vmatprep.subr.bf16.mxu0 0
    %2202 = vmatpush1.bf16.msra.mxu0 %v2143
    %2203 = vmatprep.subr.bf16.mxu0 0
    %2204 = vmatpush1.bf16.msra.mxu0 %v2144
    %2205 = vmatprep.subr.bf16.mxu0 0
    %2206 = vmatpush1.bf16.msra.mxu0 %v2145
    %2207 = vmatprep.subr.bf16.mxu0 0
    %2208 = vmatpush1.bf16.msra.mxu0 %v2146
    %2209 = vmatprep.subr.bf16.mxu0 0
    %2210 = vmatpush1.bf16.msra.mxu0 %v2147
    %2211 = vmatprep.subr.bf16.mxu0 0
    %2212 = vmatpush1.bf16.msra.mxu0 %v2148
    %2213 = vmatprep.subr.bf16.mxu0 0
    %2214 = vmatpush1.bf16.msra.mxu0 %v2149
    %2215 = vmatprep.subr.bf16.mxu0 0
    %2216 = vmatpush1.bf16.msra.mxu0 %v2150
    %2217 = vmatprep.subr.bf16.mxu0 0
    %2218 = vmatpush1.bf16.msra.mxu0 %v2151
    %2219 = vmatprep.subr.bf16.mxu0 0
    %2220 = vmatpush1.bf16.msra.mxu0 %v2152
    %2221 = vmatprep.subr.bf16.mxu0 0
    %2222 = vmatpush1.bf16.msra.mxu0 %v2153
    %2223 = vmatprep.subr.bf16.mxu0 0
    %2224 = vmatpush1.bf16.msra.mxu0 %v2154
    %2225 = vmatprep.subr.bf16.mxu0 0
    %2226 = vmatpush1.bf16.msra.mxu0 %v2155
    %2227 = vmatprep.subr.bf16.mxu0 0
    %2228 = vmatpush1.bf16.msra.mxu0 %v2156
    %2229 = vmatprep.subr.bf16.mxu0 0
    %2230 = vmatpush1.bf16.msra.mxu0 %v2157
    %2231 = vmatprep.mubr.bf16.mxu0 %v2109
    %2232 = vmatmul.mubr.bf16.gmra.mrb[0].mxu0 %v2108
    %v2233 = vpop.f32.mrb[0].mxu0
    %v2234 = vadd.f32 %v2193, %v2233
    %v2235 = vpop.f32.mrb[0].mxu0
    %v2236 = vpop.f32.mrb[0].mxu0
    %v2237 = vadd.f32 %v2196, %v2236
    %v2238 = vpop.f32.mrb[0].mxu0
    %2239 = vdwg.mxu0
    %v2240 = vld [vmem:[%s8] sm:$0x1]
    %v2242 = vlaneseq
    %v2243 = vshrl.u32 %v2242, 7
    %v2244 = vsub.s32 0, %v2243
    %v2245 = vrot.slane %v2240, %v2244
    %v2247 = vmul.f32 %v2234, %v2245
    %v2248 = vmul.f32 %v2237, %v2245
    %v2249 = vld [vmem:[%s9] sm:$0x1]
    %v2251 = vlaneseq
    %v2252 = vshrl.u32 %v2251, 7
    %v2253 = vsub.s32 0, %v2252
    %v2254 = vrot.slane %v2249, %v2253
    %v2256 = vadd.f32 %v2247, %v2254
    %v2257 = vadd.f32 %v2248, %v2254
    %v2258 = vxor.u32 %v2256, 2147483648
    %v2259 = vxor.u32 %v2257, 2147483648
    %v2260 = vmul.f32 %v2258, 1.442695
    %v2261 = vpow.pop %v2260
    %v2262 = vmul.f32 %v2259, 1.442695
    %v2263 = vpow.pop %v2262
    %v2264 = vadd.f32 %v2261, 1.0
    %v2265 = vadd.f32 %v2263, 1.0
    %v2266 = vrcp.pop %v2264
    %v2267 = vmul.f32 1.0, %v2266
    %v2268 = vrcp.pop %v2265
    %v2269 = vmul.f32 1.0, %v2268
    %2270 = vst [vmem:[%s10] sm:$0xff] %v2267
    %2271 = vst [vmem:[%s10 + $0x8] sm:$0xff] %v2269
    // Predicated region
    $region46: #{_lambda_.1} parent=1 // pred_check
      _
    $region47: #{_lambda_.1} parent=1 // pred_check_branch
      %2273 = sbr.rel (0) target = $region49
    $region48: #{_lambda_.1} parent=1 // pred_region
      _
    $region49: #{_lambda_.1} parent=1 // pred_fallthru
      _
    // Predicated region
    $region50: #{_lambda_.1} parent=1 // pred_check
      _
    $region51: #{_lambda_.1} parent=1 // pred_check_branch
      %2275 = sbr.rel (0) target = $region53
    $region52: #{_lambda_.1} parent=1 // pred_region
      _
    $region53: #{_lambda_.1} parent=1 // pred_fallthru
      _
    %2276 = vsyncpa [#allocation3], 1

</llo_original>
